<compile_context>
chip_gen: v7x
topology: tpu7x:2x2x1
jax: 0.10.0
libtpu: 0.0.40
codegen_flags: <defaults>
</compile_context>

<pallas_src>
import math
from functools import partial

import jax
import jax.numpy as jnp
from jax.experimental import pallas as pl
from jax.experimental.pallas import tpu as pltpu

D_MODEL = 32
NHEAD = 4
DIM_FF = D_MODEL * 4
LN_EPS = 1e-5


# ----------------------------------------------------------------------------
# Pallas kernel: whole encoder layer (MHA + FFN + 2x LayerNorm), whole batch.
# All refs are 2-D and lane-dense where possible; batch/seq are static.
# ----------------------------------------------------------------------------
def encoder_layer_kernel(x_ref, pe_ref, wqkvo_ref, bias_ref, w1_ref, w2_ref,
                         vec_ref, o_ref, *, batch, seq):
    BS, D = x_ref.shape          # (B*S, D)
    H = NHEAD
    Dh = D // H

    # Packed (5, D) vector params: [b2, ln1w, ln1b, ln2w, ln2b].
    vecs = vec_ref[...]
    b2 = vecs[0:1, :]
    ln1w = vecs[1:2, :]
    ln1b = vecs[2:3, :]
    ln2w = vecs[3:4, :]
    ln2b = vecs[4:5, :]

    # Packed (2, 4D) bias slab: row 0 = bq|bk|bv|bo, row 1 = b1.
    bias = bias_ref[...]
    bqkvo = bias[0:1, :]
    b1 = bias[1:2, :]
    bo = bqkvo[:, 3 * D:4 * D]

    # Packed (D, 4D) weight slab: columns = Wq|Wk|Wv|Wo.
    wqkvo = wqkvo_ref[...]
    wo = wqkvo[:, 3 * D:4 * D]                       # (D, D)

    # x + positional encoding (already flattened to (B*S, D) by the wrapper).
    x2 = x_ref[...].astype(jnp.float32) + pe_ref[...]

    # ---- fused projection: one lane-dense MXU push with N = 4*D = 128 ------
    # Columns [0, 3D) are Q|K|V; columns [3D, 4D) (= x @ Wo + bo) are unused.
    proj = jnp.dot(x2, wqkvo, preferred_element_type=jnp.float32) + bqkvo

    # ---- multi-head self-attention (static H=4 loop, 3-D batched einsums) --
    # The output projection is folded into the head loop as
    #   sa = sum_h O_h @ Wo[h*Dh:(h+1)*Dh, :]
    # so no lane concatenate of head outputs is needed.
    scale = 1.0 / math.sqrt(Dh)
    sa = None
    for h in range(H):                               # static, H = 4
        qh = proj[:, h * Dh:(h + 1) * Dh].reshape(batch, seq, Dh)
        kh = proj[:, D + h * Dh:D + (h + 1) * Dh].reshape(batch, seq, Dh)
        vh = proj[:, 2 * D + h * Dh:2 * D + (h + 1) * Dh].reshape(batch, seq, Dh)

        s = jnp.einsum('bqd,bkd->bqk', qh, kh,
                       preferred_element_type=jnp.float32) * scale
        s = s - jnp.max(s, axis=-1, keepdims=True)
        p = jnp.exp(s)
        # Exact reciprocal (matches PyTorch's divide; approx=True would add
        # ~1e-3 relative error for negligible gain at S=8).
        p = p * pl.reciprocal(jnp.sum(p, axis=-1, keepdims=True), approx=False)
        oh = jnp.einsum('bqk,bkd->bqd', p, vh,
                        preferred_element_type=jnp.float32)   # (B, S, Dh)

        contrib = jnp.dot(oh.reshape(BS, Dh), wo[h * Dh:(h + 1) * Dh, :],
                          preferred_element_type=jnp.float32)  # (B*S, D)
        sa = contrib if sa is None else sa + contrib
    sa = sa + bo

    # ---- residual + LayerNorm 1 (post-norm) --------------------------------
    y = x2 + sa
    mu = jnp.mean(y, axis=-1, keepdims=True)
    var = jnp.mean((y - mu) ** 2, axis=-1, keepdims=True)
    y = (y - mu) * jax.lax.rsqrt(var + LN_EPS) * ln1w + ln1b

    # ---- feed-forward: linear2(relu(linear1(y))) ---------------------------
    hdd = jnp.maximum(
        jnp.dot(y, w1_ref[...], preferred_element_type=jnp.float32) + b1, 0.0)
    ff = jnp.dot(hdd, w2_ref[...], preferred_element_type=jnp.float32) + b2

    # ---- residual + LayerNorm 2 --------------------------------------------
    z = y + ff
    mu2 = jnp.mean(z, axis=-1, keepdims=True)
    var2 = jnp.mean((z - mu2) ** 2, axis=-1, keepdims=True)
    z = (z - mu2) * jax.lax.rsqrt(var2 + LN_EPS) * ln2w + ln2b

    o_ref[...] = z.astype(o_ref.dtype)


# ----------------------------------------------------------------------------
# Glue: positional encoding (hoisted), packed deterministic params, wrapper.
# ----------------------------------------------------------------------------
def positional_encoding(length, d_model):
    pos = jnp.arange(length, dtype=jnp.float32)[:, None]
    div = jnp.exp(jnp.arange(0, d_model, 2, dtype=jnp.float32)
                  * (-math.log(10000.0) / d_model))
    pe = jnp.zeros((length, d_model), jnp.float32)
    pe = pe.at[:, 0::2].set(jnp.sin(pos * div))
    pe = pe.at[:, 1::2].set(jnp.cos(pos * div))
    return pe


def make_params(key, d_model=D_MODEL, dim_ff=DIM_FF):
    assert dim_ff == 4 * d_model  # module always builds dim_feedforward = 4*d_model
    ks = jax.random.split(key, 10)
    std = 0.05
    # Weights stored already transposed: shape (in, out) so kernel does x @ W.
    wq = jax.random.normal(ks[0], (d_model, d_model), jnp.float32) * std
    wk = jax.random.normal(ks[1], (d_model, d_model), jnp.float32) * std
    wv = jax.random.normal(ks[2], (d_model, d_model), jnp.float32) * std
    wo = jax.random.normal(ks[3], (d_model, d_model), jnp.float32) * std
    w1 = jax.random.normal(ks[4], (d_model, dim_ff), jnp.float32) * std
    w2 = jax.random.normal(ks[5], (dim_ff, d_model), jnp.float32) * std
    bq = jax.random.normal(ks[6], (1, d_model), jnp.float32) * std
    bk = jax.random.normal(ks[7], (1, d_model), jnp.float32) * std
    bv = jax.random.normal(ks[8], (1, d_model), jnp.float32) * std
    bo = jax.random.normal(ks[9], (1, d_model), jnp.float32) * std
    b1 = jnp.zeros((1, dim_ff), jnp.float32)
    b2 = jnp.zeros((1, d_model), jnp.float32)
    ln1w = jnp.ones((1, d_model), jnp.float32)
    ln1b = jnp.zeros((1, d_model), jnp.float32)
    ln2w = jnp.ones((1, d_model), jnp.float32)
    ln2b = jnp.zeros((1, d_model), jnp.float32)

    # Lane-dense packed parameter layout consumed by the kernel.
    wqkvo = jnp.concatenate([wq, wk, wv, wo], axis=1)              # (D, 4D) = (32, 128)
    bqkvo = jnp.concatenate([bq, bk, bv, bo], axis=1)              # (1, 4D)
    bias2 = jnp.concatenate([bqkvo, b1], axis=0)                   # (2, 4D) = (2, 128)
    vec5 = jnp.concatenate([b2, ln1w, ln1b, ln2w, ln2b], axis=0)   # (5, D)
    return (wqkvo, bias2, w1, w2, vec5)


def simple_transformer_encoder(x, pe, params):
    B, S, D = x.shape
    BS = B * S
    wqkvo, bias2, w1, w2, vec5 = params

    # Layout plumbing stays in the wrapper (free XLA reshapes): everything the
    # kernel sees is a lane-friendly 2-D slab.
    x2 = x.reshape(BS, D)
    pe2 = jnp.broadcast_to(pe[None, :, :], (B, S, D)).reshape(BS, D)

    args = (x2, pe2, wqkvo, bias2, w1, w2, vec5)

    def full_spec(a):
        nd = a.ndim
        return pl.BlockSpec(a.shape, lambda i, _nd=nd: (0,) * _nd)

    in_specs = [full_spec(a) for a in args]
    out_spec = pl.BlockSpec((BS, D), lambda i: (0, 0))

    # Advisory cost estimate so XLA schedules/overlaps the custom call.
    ff = w1.shape[1]
    dh = D // NHEAD
    flops = (2 * BS * D * 4 * D                                      # fused projection
             + NHEAD * (4 * B * S * S * dh + 2 * BS * dh * D)        # attention + folded out-proj
             + 4 * BS * D * ff)                                      # FFN
    transcendentals = B * NHEAD * S * S + 2 * BS                     # exp + rsqrt
    bytes_accessed = (sum(int(a.size) * a.dtype.itemsize for a in args)
                      + BS * D * x.dtype.itemsize)

    out2 = pl.pallas_call(
        partial(encoder_layer_kernel, batch=B, seq=S),
        out_shape=jax.ShapeDtypeStruct((BS, D), x.dtype),
        grid_spec=pltpu.PrefetchScalarGridSpec(
            num_scalar_prefetch=0,
            grid=(1,),                    # single step: whole (tiny) batch at once
            in_specs=in_specs,
            out_specs=out_spec,
        ),
        compiler_params=pltpu.CompilerParams(
            dimension_semantics=("arbitrary",)),
        cost_estimate=pl.CostEstimate(
            flops=int(flops),
            transcendentals=int(transcendentals),
            bytes_accessed=int(bytes_accessed)),
    )(*args)

    return out2.reshape(B, S, D)


if __name__ == "__main__":
    B, S = 2, 8
    key = jax.random.PRNGKey(0)
    kx, kp = jax.random.split(key)
    x = jax.random.normal(kx, (B, S, D_MODEL), jnp.float32)
    params = make_params(kp)
    pe = positional_encoding(S, D_MODEL)        # hoisted: computed once

    fwd = jax.jit(simple_transformer_encoder)
    out = fwd(x, pe, params)
    jax.block_until_ready(out)
    assert out.shape == (B, S, D_MODEL)
    print("KERNEL_OK")
</pallas_src>

<mosaic_0001>
module attributes {stable_mosaic.version = 11 : i64} {
  func.func @encoder_layer_kernel(%arg0: i32, %arg1: memref<16x32xf32, #tpu.memory_space<vmem>>, %arg2: memref<16x32xf32, #tpu.memory_space<vmem>>, %arg3: memref<32x128xf32, #tpu.memory_space<vmem>>, %arg4: memref<2x128xf32, #tpu.memory_space<vmem>>, %arg5: memref<32x128xf32, #tpu.memory_space<vmem>>, %arg6: memref<128x32xf32, #tpu.memory_space<vmem>>, %arg7: memref<5x32xf32, #tpu.memory_space<vmem>>, %arg8: memref<16x32xf32, #tpu.memory_space<vmem>>) attributes {dimension_semantics = [#tpu.dimension_semantics<arbitrary>], iteration_bounds = array<i64: 1>, scalar_prefetch = 0 : i64, scratch_operands = 0 : i64, tpu.core_type = #tpu.core_type<tc>, window_params = [{pipeline_mode = #tpu.pipeline_mode<synchronous>, transform_indices = @transform_0, window_bounds = array<i64: 16, 32>}, {pipeline_mode = #tpu.pipeline_mode<synchronous>, transform_indices = @transform_1, window_bounds = array<i64: 16, 32>}, {pipeline_mode = #tpu.pipeline_mode<synchronous>, transform_indices = @transform_2, window_bounds = array<i64: 32, 128>}, {pipeline_mode = #tpu.pipeline_mode<synchronous>, transform_indices = @transform_3, window_bounds = array<i64: 2, 128>}, {pipeline_mode = #tpu.pipeline_mode<synchronous>, transform_indices = @transform_4, window_bounds = array<i64: 32, 128>}, {pipeline_mode = #tpu.pipeline_mode<synchronous>, transform_indices = @transform_5, window_bounds = array<i64: 128, 32>}, {pipeline_mode = #tpu.pipeline_mode<synchronous>, transform_indices = @transform_6, window_bounds = array<i64: 5, 32>}, {pipeline_mode = #tpu.pipeline_mode<synchronous>, transform_indices = @transform_7, window_bounds = array<i64: 16, 32>}]} {
    %c0 = arith.constant 0 : index
    %c0_0 = arith.constant 0 : index
    %0 = vector.load %arg7[%c0, %c0_0] : memref<5x32xf32, #tpu.memory_space<vmem>>, vector<5x32xf32>
    %1 = vector.extract_strided_slice %0 {offsets = [0, 0], sizes = [1, 32], strides = [1, 1]} : vector<5x32xf32> to vector<1x32xf32>
    %2 = vector.extract_strided_slice %0 {offsets = [1, 0], sizes = [1, 32], strides = [1, 1]} : vector<5x32xf32> to vector<1x32xf32>
    %3 = vector.extract_strided_slice %0 {offsets = [2, 0], sizes = [1, 32], strides = [1, 1]} : vector<5x32xf32> to vector<1x32xf32>
    %4 = vector.extract_strided_slice %0 {offsets = [3, 0], sizes = [1, 32], strides = [1, 1]} : vector<5x32xf32> to vector<1x32xf32>
    %5 = vector.extract_strided_slice %0 {offsets = [4, 0], sizes = [1, 32], strides = [1, 1]} : vector<5x32xf32> to vector<1x32xf32>
    %c0_1 = arith.constant 0 : index
    %c0_2 = arith.constant 0 : index
    %6 = vector.load %arg4[%c0_1, %c0_2] : memref<2x128xf32, #tpu.memory_space<vmem>>, vector<2x128xf32>
    %7 = vector.extract_strided_slice %6 {offsets = [0, 0], sizes = [1, 128], strides = [1, 1]} : vector<2x128xf32> to vector<1x128xf32>
    %8 = vector.extract_strided_slice %6 {offsets = [1, 0], sizes = [1, 128], strides = [1, 1]} : vector<2x128xf32> to vector<1x128xf32>
    %9 = vector.extract_strided_slice %7 {offsets = [0, 96], sizes = [1, 32], strides = [1, 1]} : vector<1x128xf32> to vector<1x32xf32>
    %c0_3 = arith.constant 0 : index
    %c0_4 = arith.constant 0 : index
    %10 = vector.load %arg3[%c0_3, %c0_4] : memref<32x128xf32, #tpu.memory_space<vmem>>, vector<32x128xf32>
    %11 = vector.extract_strided_slice %10 {offsets = [0, 96], sizes = [32, 32], strides = [1, 1]} : vector<32x128xf32> to vector<32x32xf32>
    %c0_5 = arith.constant 0 : index
    %c0_6 = arith.constant 0 : index
    %12 = vector.load %arg1[%c0_5, %c0_6] : memref<16x32xf32, #tpu.memory_space<vmem>>, vector<16x32xf32>
    %c0_7 = arith.constant 0 : index
    %c0_8 = arith.constant 0 : index
    %13 = vector.load %arg2[%c0_7, %c0_8] : memref<16x32xf32, #tpu.memory_space<vmem>>, vector<16x32xf32>
    %14 = arith.addf %12, %13 : vector<16x32xf32>
    %cst = arith.constant dense<0.000000e+00> : vector<16x128xf32>
    %15 = tpu.matmul %14, %10, %cst {dimension_numbers = #tpu.dot_dimension_numbers<[1], [0], [0], [1], [0, 0, 1, 1], [], []>} : vector<16x32xf32>, vector<32x128xf32>, vector<16x128xf32> -> vector<16x128xf32>
    %16 = vector.broadcast %7 : vector<1x128xf32> to vector<16x128xf32>
    %17 = arith.addf %15, %16 : vector<16x128xf32>
    %18 = vector.extract_strided_slice %17 {offsets = [0, 0], sizes = [16, 8], strides = [1, 1]} : vector<16x128xf32> to vector<16x8xf32>
    %19 = vector.shape_cast %18 : vector<16x8xf32> to vector<2x8x8xf32>
    %20 = vector.extract_strided_slice %17 {offsets = [0, 32], sizes = [16, 8], strides = [1, 1]} : vector<16x128xf32> to vector<16x8xf32>
    %21 = vector.shape_cast %20 : vector<16x8xf32> to vector<2x8x8xf32>
    %22 = vector.extract_strided_slice %17 {offsets = [0, 64], sizes = [16, 8], strides = [1, 1]} : vector<16x128xf32> to vector<16x8xf32>
    %23 = vector.shape_cast %22 : vector<16x8xf32> to vector<2x8x8xf32>
    "tpu.trace_start"() <{level = 10 : i32, message = "bqd,bkd->bqk"}> : () -> ()
    %cst_9 = arith.constant dense<0.000000e+00> : vector<2x8x8xf32>
    %24 = tpu.matmul %19, %21, %cst_9 {dimension_numbers = #tpu.dot_dimension_numbers<[2], [2], [1], [1], [0, 0, 0, 1, 1, 1], [0], [0]>} : vector<2x8x8xf32>, vector<2x8x8xf32>, vector<2x8x8xf32> -> vector<2x8x8xf32>
    "tpu.trace_stop"() : () -> ()
    %cst_10 = arith.constant 0.353553385 : f32
    %25 = vector.broadcast %cst_10 : f32 to vector<2x8x8xf32>
    %26 = arith.mulf %24, %25 : vector<2x8x8xf32>
    %cst_11 = arith.constant dense<0xFF800000> : vector<2x8xf32>
    %27 = vector.multi_reduction <maximumf>, %26, %cst_11 [2] : vector<2x8x8xf32> to vector<2x8xf32>
    %28 = vector.shape_cast %27 : vector<2x8xf32> to vector<2x8x1xf32>
    %29 = vector.broadcast %28 : vector<2x8x1xf32> to vector<2x8x8xf32>
    %30 = arith.subf %26, %29 : vector<2x8x8xf32>
    %31 = math.exp %30 : vector<2x8x8xf32>
    %cst_12 = arith.constant dense<0.000000e+00> : vector<2x8xf32>
    %32 = vector.multi_reduction <add>, %31, %cst_12 [2] : vector<2x8x8xf32> to vector<2x8xf32>
    %33 = vector.shape_cast %32 : vector<2x8xf32> to vector<2x8x1xf32>
    %34 = tpu.reciprocal %33 : vector<2x8x1xf32> -> vector<2x8x1xf32>
    %35 = vector.broadcast %34 : vector<2x8x1xf32> to vector<2x8x8xf32>
    %36 = arith.mulf %31, %35 : vector<2x8x8xf32>
    "tpu.trace_start"() <{level = 10 : i32, message = "bqk,bkd->bqd"}> : () -> ()
    %cst_13 = arith.constant dense<0.000000e+00> : vector<2x8x8xf32>
    %37 = tpu.matmul %36, %23, %cst_13 {dimension_numbers = #tpu.dot_dimension_numbers<[2], [1], [1], [2], [0, 0, 0, 1, 1, 2], [0], [0]>} : vector<2x8x8xf32>, vector<2x8x8xf32>, vector<2x8x8xf32> -> vector<2x8x8xf32>
    "tpu.trace_stop"() : () -> ()
    %38 = vector.shape_cast %37 : vector<2x8x8xf32> to vector<16x8xf32>
    %39 = vector.extract_strided_slice %11 {offsets = [0, 0], sizes = [8, 32], strides = [1, 1]} : vector<32x32xf32> to vector<8x32xf32>
    %cst_14 = arith.constant dense<0.000000e+00> : vector<16x32xf32>
    %40 = tpu.matmul %38, %39, %cst_14 {dimension_numbers = #tpu.dot_dimension_numbers<[1], [0], [0], [1], [0, 0, 1, 1], [], []>} : vector<16x8xf32>, vector<8x32xf32>, vector<16x32xf32> -> vector<16x32xf32>
    %41 = vector.extract_strided_slice %17 {offsets = [0, 8], sizes = [16, 8], strides = [1, 1]} : vector<16x128xf32> to vector<16x8xf32>
    %42 = vector.shape_cast %41 : vector<16x8xf32> to vector<2x8x8xf32>
    %43 = vector.extract_strided_slice %17 {offsets = [0, 40], sizes = [16, 8], strides = [1, 1]} : vector<16x128xf32> to vector<16x8xf32>
    %44 = vector.shape_cast %43 : vector<16x8xf32> to vector<2x8x8xf32>
    %45 = vector.extract_strided_slice %17 {offsets = [0, 72], sizes = [16, 8], strides = [1, 1]} : vector<16x128xf32> to vector<16x8xf32>
    %46 = vector.shape_cast %45 : vector<16x8xf32> to vector<2x8x8xf32>
    "tpu.trace_start"() <{level = 10 : i32, message = "bqd,bkd->bqk"}> : () -> ()
    %cst_15 = arith.constant dense<0.000000e+00> : vector<2x8x8xf32>
    %47 = tpu.matmul %42, %44, %cst_15 {dimension_numbers = #tpu.dot_dimension_numbers<[2], [2], [1], [1], [0, 0, 0, 1, 1, 1], [0], [0]>} : vector<2x8x8xf32>, vector<2x8x8xf32>, vector<2x8x8xf32> -> vector<2x8x8xf32>
    "tpu.trace_stop"() : () -> ()
    %cst_16 = arith.constant 0.353553385 : f32
    %48 = vector.broadcast %cst_16 : f32 to vector<2x8x8xf32>
    %49 = arith.mulf %47, %48 : vector<2x8x8xf32>
    %cst_17 = arith.constant dense<0xFF800000> : vector<2x8xf32>
    %50 = vector.multi_reduction <maximumf>, %49, %cst_17 [2] : vector<2x8x8xf32> to vector<2x8xf32>
    %51 = vector.shape_cast %50 : vector<2x8xf32> to vector<2x8x1xf32>
    %52 = vector.broadcast %51 : vector<2x8x1xf32> to vector<2x8x8xf32>
    %53 = arith.subf %49, %52 : vector<2x8x8xf32>
    %54 = math.exp %53 : vector<2x8x8xf32>
    %cst_18 = arith.constant dense<0.000000e+00> : vector<2x8xf32>
    %55 = vector.multi_reduction <add>, %54, %cst_18 [2] : vector<2x8x8xf32> to vector<2x8xf32>
    %56 = vector.shape_cast %55 : vector<2x8xf32> to vector<2x8x1xf32>
    %57 = tpu.reciprocal %56 : vector<2x8x1xf32> -> vector<2x8x1xf32>
    %58 = vector.broadcast %57 : vector<2x8x1xf32> to vector<2x8x8xf32>
    %59 = arith.mulf %54, %58 : vector<2x8x8xf32>
    "tpu.trace_start"() <{level = 10 : i32, message = "bqk,bkd->bqd"}> : () -> ()
    %cst_19 = arith.constant dense<0.000000e+00> : vector<2x8x8xf32>
    %60 = tpu.matmul %59, %46, %cst_19 {dimension_numbers = #tpu.dot_dimension_numbers<[2], [1], [1], [2], [0, 0, 0, 1, 1, 2], [0], [0]>} : vector<2x8x8xf32>, vector<2x8x8xf32>, vector<2x8x8xf32> -> vector<2x8x8xf32>
    "tpu.trace_stop"() : () -> ()
    %61 = vector.shape_cast %60 : vector<2x8x8xf32> to vector<16x8xf32>
    %62 = vector.extract_strided_slice %11 {offsets = [8, 0], sizes = [8, 32], strides = [1, 1]} : vector<32x32xf32> to vector<8x32xf32>
    %cst_20 = arith.constant dense<0.000000e+00> : vector<16x32xf32>
    %63 = tpu.matmul %61, %62, %cst_20 {dimension_numbers = #tpu.dot_dimension_numbers<[1], [0], [0], [1], [0, 0, 1, 1], [], []>} : vector<16x8xf32>, vector<8x32xf32>, vector<16x32xf32> -> vector<16x32xf32>
    %64 = arith.addf %40, %63 : vector<16x32xf32>
    %65 = vector.extract_strided_slice %17 {offsets = [0, 16], sizes = [16, 8], strides = [1, 1]} : vector<16x128xf32> to vector<16x8xf32>
    %66 = vector.shape_cast %65 : vector<16x8xf32> to vector<2x8x8xf32>
    %67 = vector.extract_strided_slice %17 {offsets = [0, 48], sizes = [16, 8], strides = [1, 1]} : vector<16x128xf32> to vector<16x8xf32>
    %68 = vector.shape_cast %67 : vector<16x8xf32> to vector<2x8x8xf32>
    %69 = vector.extract_strided_slice %17 {offsets = [0, 80], sizes = [16, 8], strides = [1, 1]} : vector<16x128xf32> to vector<16x8xf32>
    %70 = vector.shape_cast %69 : vector<16x8xf32> to vector<2x8x8xf32>
    "tpu.trace_start"() <{level = 10 : i32, message = "bqd,bkd->bqk"}> : () -> ()
    %cst_21 = arith.constant dense<0.000000e+00> : vector<2x8x8xf32>
    %71 = tpu.matmul %66, %68, %cst_21 {dimension_numbers = #tpu.dot_dimension_numbers<[2], [2], [1], [1], [0, 0, 0, 1, 1, 1], [0], [0]>} : vector<2x8x8xf32>, vector<2x8x8xf32>, vector<2x8x8xf32> -> vector<2x8x8xf32>
    "tpu.trace_stop"() : () -> ()
    %cst_22 = arith.constant 0.353553385 : f32
    %72 = vector.broadcast %cst_22 : f32 to vector<2x8x8xf32>
    %73 = arith.mulf %71, %72 : vector<2x8x8xf32>
    %cst_23 = arith.constant dense<0xFF800000> : vector<2x8xf32>
    %74 = vector.multi_reduction <maximumf>, %73, %cst_23 [2] : vector<2x8x8xf32> to vector<2x8xf32>
    %75 = vector.shape_cast %74 : vector<2x8xf32> to vector<2x8x1xf32>
    %76 = vector.broadcast %75 : vector<2x8x1xf32> to vector<2x8x8xf32>
    %77 = arith.subf %73, %76 : vector<2x8x8xf32>
    %78 = math.exp %77 : vector<2x8x8xf32>
    %cst_24 = arith.constant dense<0.000000e+00> : vector<2x8xf32>
    %79 = vector.multi_reduction <add>, %78, %cst_24 [2] : vector<2x8x8xf32> to vector<2x8xf32>
    %80 = vector.shape_cast %79 : vector<2x8xf32> to vector<2x8x1xf32>
    %81 = tpu.reciprocal %80 : vector<2x8x1xf32> -> vector<2x8x1xf32>
    %82 = vector.broadcast %81 : vector<2x8x1xf32> to vector<2x8x8xf32>
    %83 = arith.mulf %78, %82 : vector<2x8x8xf32>
    "tpu.trace_start"() <{level = 10 : i32, message = "bqk,bkd->bqd"}> : () -> ()
    %cst_25 = arith.constant dense<0.000000e+00> : vector<2x8x8xf32>
    %84 = tpu.matmul %83, %70, %cst_25 {dimension_numbers = #tpu.dot_dimension_numbers<[2], [1], [1], [2], [0, 0, 0, 1, 1, 2], [0], [0]>} : vector<2x8x8xf32>, vector<2x8x8xf32>, vector<2x8x8xf32> -> vector<2x8x8xf32>
    "tpu.trace_stop"() : () -> ()
    %85 = vector.shape_cast %84 : vector<2x8x8xf32> to vector<16x8xf32>
    %86 = vector.extract_strided_slice %11 {offsets = [16, 0], sizes = [8, 32], strides = [1, 1]} : vector<32x32xf32> to vector<8x32xf32>
    %cst_26 = arith.constant dense<0.000000e+00> : vector<16x32xf32>
    %87 = tpu.matmul %85, %86, %cst_26 {dimension_numbers = #tpu.dot_dimension_numbers<[1], [0], [0], [1], [0, 0, 1, 1], [], []>} : vector<16x8xf32>, vector<8x32xf32>, vector<16x32xf32> -> vector<16x32xf32>
    %88 = arith.addf %64, %87 : vector<16x32xf32>
    %89 = vector.extract_strided_slice %17 {offsets = [0, 24], sizes = [16, 8], strides = [1, 1]} : vector<16x128xf32> to vector<16x8xf32>
    %90 = vector.shape_cast %89 : vector<16x8xf32> to vector<2x8x8xf32>
    %91 = vector.extract_strided_slice %17 {offsets = [0, 56], sizes = [16, 8], strides = [1, 1]} : vector<16x128xf32> to vector<16x8xf32>
    %92 = vector.shape_cast %91 : vector<16x8xf32> to vector<2x8x8xf32>
    %93 = vector.extract_strided_slice %17 {offsets = [0, 88], sizes = [16, 8], strides = [1, 1]} : vector<16x128xf32> to vector<16x8xf32>
    %94 = vector.shape_cast %93 : vector<16x8xf32> to vector<2x8x8xf32>
    "tpu.trace_start"() <{level = 10 : i32, message = "bqd,bkd->bqk"}> : () -> ()
    %cst_27 = arith.constant dense<0.000000e+00> : vector<2x8x8xf32>
    %95 = tpu.matmul %90, %92, %cst_27 {dimension_numbers = #tpu.dot_dimension_numbers<[2], [2], [1], [1], [0, 0, 0, 1, 1, 1], [0], [0]>} : vector<2x8x8xf32>, vector<2x8x8xf32>, vector<2x8x8xf32> -> vector<2x8x8xf32>
    "tpu.trace_stop"() : () -> ()
    %cst_28 = arith.constant 0.353553385 : f32
    %96 = vector.broadcast %cst_28 : f32 to vector<2x8x8xf32>
    %97 = arith.mulf %95, %96 : vector<2x8x8xf32>
    %cst_29 = arith.constant dense<0xFF800000> : vector<2x8xf32>
    %98 = vector.multi_reduction <maximumf>, %97, %cst_29 [2] : vector<2x8x8xf32> to vector<2x8xf32>
    %99 = vector.shape_cast %98 : vector<2x8xf32> to vector<2x8x1xf32>
    %100 = vector.broadcast %99 : vector<2x8x1xf32> to vector<2x8x8xf32>
    %101 = arith.subf %97, %100 : vector<2x8x8xf32>
    %102 = math.exp %101 : vector<2x8x8xf32>
    %cst_30 = arith.constant dense<0.000000e+00> : vector<2x8xf32>
    %103 = vector.multi_reduction <add>, %102, %cst_30 [2] : vector<2x8x8xf32> to vector<2x8xf32>
    %104 = vector.shape_cast %103 : vector<2x8xf32> to vector<2x8x1xf32>
    %105 = tpu.reciprocal %104 : vector<2x8x1xf32> -> vector<2x8x1xf32>
    %106 = vector.broadcast %105 : vector<2x8x1xf32> to vector<2x8x8xf32>
    %107 = arith.mulf %102, %106 : vector<2x8x8xf32>
    "tpu.trace_start"() <{level = 10 : i32, message = "bqk,bkd->bqd"}> : () -> ()
    %cst_31 = arith.constant dense<0.000000e+00> : vector<2x8x8xf32>
    %108 = tpu.matmul %107, %94, %cst_31 {dimension_numbers = #tpu.dot_dimension_numbers<[2], [1], [1], [2], [0, 0, 0, 1, 1, 2], [0], [0]>} : vector<2x8x8xf32>, vector<2x8x8xf32>, vector<2x8x8xf32> -> vector<2x8x8xf32>
    "tpu.trace_stop"() : () -> ()
    %109 = vector.shape_cast %108 : vector<2x8x8xf32> to vector<16x8xf32>
    %110 = vector.extract_strided_slice %11 {offsets = [24, 0], sizes = [8, 32], strides = [1, 1]} : vector<32x32xf32> to vector<8x32xf32>
    %cst_32 = arith.constant dense<0.000000e+00> : vector<16x32xf32>
    %111 = tpu.matmul %109, %110, %cst_32 {dimension_numbers = #tpu.dot_dimension_numbers<[1], [0], [0], [1], [0, 0, 1, 1], [], []>} : vector<16x8xf32>, vector<8x32xf32>, vector<16x32xf32> -> vector<16x32xf32>
    %112 = arith.addf %88, %111 : vector<16x32xf32>
    %113 = vector.broadcast %9 : vector<1x32xf32> to vector<16x32xf32>
    %114 = arith.addf %112, %113 : vector<16x32xf32>
    %115 = arith.addf %14, %114 : vector<16x32xf32>
    %cst_33 = arith.constant dense<0.000000e+00> : vector<16xf32>
    %116 = vector.multi_reduction <add>, %115, %cst_33 [1] : vector<16x32xf32> to vector<16xf32>
    %117 = vector.shape_cast %116 : vector<16xf32> to vector<16x1xf32>
    %cst_34 = arith.constant 3.200000e+01 : f32
    %118 = vector.broadcast %cst_34 : f32 to vector<16x1xf32>
    %119 = arith.divf %117, %118 : vector<16x1xf32>
    %120 = vector.broadcast %119 : vector<16x1xf32> to vector<16x32xf32>
    %121 = arith.subf %115, %120 : vector<16x32xf32>
    %122 = arith.mulf %121, %121 : vector<16x32xf32>
    %cst_35 = arith.constant dense<0.000000e+00> : vector<16xf32>
    %123 = vector.multi_reduction <add>, %122, %cst_35 [1] : vector<16x32xf32> to vector<16xf32>
    %124 = vector.shape_cast %123 : vector<16xf32> to vector<16x1xf32>
    %cst_36 = arith.constant 3.200000e+01 : f32
    %125 = vector.broadcast %cst_36 : f32 to vector<16x1xf32>
    %126 = arith.divf %124, %125 : vector<16x1xf32>
    %127 = vector.broadcast %119 : vector<16x1xf32> to vector<16x32xf32>
    %128 = arith.subf %115, %127 : vector<16x32xf32>
    %cst_37 = arith.constant 9.99999974E-6 : f32
    %129 = vector.broadcast %cst_37 : f32 to vector<16x1xf32>
    %130 = arith.addf %126, %129 : vector<16x1xf32>
    %131 = math.rsqrt %130 : vector<16x1xf32>
    %132 = vector.broadcast %131 : vector<16x1xf32> to vector<16x32xf32>
    %133 = arith.mulf %128, %132 : vector<16x32xf32>
    %134 = vector.broadcast %2 : vector<1x32xf32> to vector<16x32xf32>
    %135 = arith.mulf %133, %134 : vector<16x32xf32>
    %136 = vector.broadcast %3 : vector<1x32xf32> to vector<16x32xf32>
    %137 = arith.addf %135, %136 : vector<16x32xf32>
    %c0_38 = arith.constant 0 : index
    %c0_39 = arith.constant 0 : index
    %138 = vector.load %arg5[%c0_38, %c0_39] : memref<32x128xf32, #tpu.memory_space<vmem>>, vector<32x128xf32>
    %cst_40 = arith.constant dense<0.000000e+00> : vector<16x128xf32>
    %139 = tpu.matmul %137, %138, %cst_40 {dimension_numbers = #tpu.dot_dimension_numbers<[1], [0], [0], [1], [0, 0, 1, 1], [], []>} : vector<16x32xf32>, vector<32x128xf32>, vector<16x128xf32> -> vector<16x128xf32>
    %140 = vector.broadcast %8 : vector<1x128xf32> to vector<16x128xf32>
    %141 = arith.addf %139, %140 : vector<16x128xf32>
    %cst_41 = arith.constant 0.000000e+00 : f32
    %142 = vector.broadcast %cst_41 : f32 to vector<16x128xf32>
    %143 = arith.maximumf %141, %142 : vector<16x128xf32>
    %c0_42 = arith.constant 0 : index
    %c0_43 = arith.constant 0 : index
    %144 = vector.load %arg6[%c0_42, %c0_43] : memref<128x32xf32, #tpu.memory_space<vmem>>, vector<128x32xf32>
    %cst_44 = arith.constant dense<0.000000e+00> : vector<16x32xf32>
    %145 = tpu.matmul %143, %144, %cst_44 {dimension_numbers = #tpu.dot_dimension_numbers<[1], [0], [0], [1], [0, 0, 1, 1], [], []>} : vector<16x128xf32>, vector<128x32xf32>, vector<16x32xf32> -> vector<16x32xf32>
    %146 = vector.broadcast %1 : vector<1x32xf32> to vector<16x32xf32>
    %147 = arith.addf %145, %146 : vector<16x32xf32>
    %148 = arith.addf %137, %147 : vector<16x32xf32>
    %cst_45 = arith.constant dense<0.000000e+00> : vector<16xf32>
    %149 = vector.multi_reduction <add>, %148, %cst_45 [1] : vector<16x32xf32> to vector<16xf32>
    %150 = vector.shape_cast %149 : vector<16xf32> to vector<16x1xf32>
    %cst_46 = arith.constant 3.200000e+01 : f32
    %151 = vector.broadcast %cst_46 : f32 to vector<16x1xf32>
    %152 = arith.divf %150, %151 : vector<16x1xf32>
    %153 = vector.broadcast %152 : vector<16x1xf32> to vector<16x32xf32>
    %154 = arith.subf %148, %153 : vector<16x32xf32>
    %155 = arith.mulf %154, %154 : vector<16x32xf32>
    %cst_47 = arith.constant dense<0.000000e+00> : vector<16xf32>
    %156 = vector.multi_reduction <add>, %155, %cst_47 [1] : vector<16x32xf32> to vector<16xf32>
    %157 = vector.shape_cast %156 : vector<16xf32> to vector<16x1xf32>
    %cst_48 = arith.constant 3.200000e+01 : f32
    %158 = vector.broadcast %cst_48 : f32 to vector<16x1xf32>
    %159 = arith.divf %157, %158 : vector<16x1xf32>
    %160 = vector.broadcast %152 : vector<16x1xf32> to vector<16x32xf32>
    %161 = arith.subf %148, %160 : vector<16x32xf32>
    %cst_49 = arith.constant 9.99999974E-6 : f32
    %162 = vector.broadcast %cst_49 : f32 to vector<16x1xf32>
    %163 = arith.addf %159, %162 : vector<16x1xf32>
    %164 = math.rsqrt %163 : vector<16x1xf32>
    %165 = vector.broadcast %164 : vector<16x1xf32> to vector<16x32xf32>
    %166 = arith.mulf %161, %165 : vector<16x32xf32>
    %167 = vector.broadcast %4 : vector<1x32xf32> to vector<16x32xf32>
    %168 = arith.mulf %166, %167 : vector<16x32xf32>
    %169 = vector.broadcast %5 : vector<1x32xf32> to vector<16x32xf32>
    %170 = arith.addf %168, %169 : vector<16x32xf32>
    %c0_50 = arith.constant 0 : index
    %c0_51 = arith.constant 0 : index
    %171 = vector.load %arg8[%c0_50, %c0_51] : memref<16x32xf32, #tpu.memory_space<vmem>>, vector<16x32xf32>
    tpu.vector_store %arg8[%c0_50, %c0_51], %170 {strides = array<i32>} : memref<16x32xf32, #tpu.memory_space<vmem>>, vector<16x32xf32>,
    return
  }
  func.func @transform_0(%arg0: i32) -> (i32, i32) {
    %c0_i32 = arith.constant 0 : i32
    %c0_i32_0 = arith.constant 0 : i32
    %c0_i32_1 = arith.constant 0 : i32
    return %c0_i32, %c0_i32_0 : i32, i32
  }
  func.func @transform_1(%arg0: i32) -> (i32, i32) {
    %c0_i32 = arith.constant 0 : i32
    %c0_i32_0 = arith.constant 0 : i32
    %c0_i32_1 = arith.constant 0 : i32
    return %c0_i32, %c0_i32_0 : i32, i32
  }
  func.func @transform_2(%arg0: i32) -> (i32, i32) {
    %c0_i32 = arith.constant 0 : i32
    %c0_i32_0 = arith.constant 0 : i32
    %c0_i32_1 = arith.constant 0 : i32
    return %c0_i32, %c0_i32_0 : i32, i32
  }
  func.func @transform_3(%arg0: i32) -> (i32, i32) {
    %c0_i32 = arith.constant 0 : i32
    %c0_i32_0 = arith.constant 0 : i32
    %c0_i32_1 = arith.constant 0 : i32
    return %c0_i32, %c0_i32_0 : i32, i32
  }
  func.func @transform_4(%arg0: i32) -> (i32, i32) {
    %c0_i32 = arith.constant 0 : i32
    %c0_i32_0 = arith.constant 0 : i32
    %c0_i32_1 = arith.constant 0 : i32
    return %c0_i32, %c0_i32_0 : i32, i32
  }
  func.func @transform_5(%arg0: i32) -> (i32, i32) {
    %c0_i32 = arith.constant 0 : i32
    %c0_i32_0 = arith.constant 0 : i32
    %c0_i32_1 = arith.constant 0 : i32
    return %c0_i32, %c0_i32_0 : i32, i32
  }
  func.func @transform_6(%arg0: i32) -> (i32, i32) {
    %c0_i32 = arith.constant 0 : i32
    %c0_i32_0 = arith.constant 0 : i32
    %c0_i32_1 = arith.constant 0 : i32
    return %c0_i32, %c0_i32_0 : i32, i32
  }
  func.func @transform_7(%arg0: i32) -> (i32, i32) {
    %c0_i32 = arith.constant 0 : i32
    %c0_i32_0 = arith.constant 0 : i32
    %c0_i32_1 = arith.constant 0 : i32
    return %c0_i32, %c0_i32_0 : i32, i32
  }
}

</mosaic_0001>

<llo_original>
// kernel: simple_transformer_encoder.1
$region0: #{simple_transformer_encoder.1}
  #allocation0 [shape = 'u32[]', space=smem, size = 0x4, offset = 0x4, fixed_abs, tag = 'smem constant byte address 0x4 - core index']
  #allocation1 [shape = 'u32[144,128]{1,0:T(1,128)}', space=vmem, size = 0x12000, scoped, tag = 'internal scratch']
  %s0 = inlined_call_operand.vmem [shape: f32[16,32], index: 0, kind: input, shape index: {}]
  %s1 = inlined_call_operand.vmem [shape: f32[16,32], index: 1, kind: input, shape index: {}]
  %s2 = inlined_call_operand.vmem [shape: f32[32,128], index: 2, kind: input, shape index: {}]
  %s3 = inlined_call_operand.vmem [shape: f32[2,128], index: 3, kind: input, shape index: {}]
  %s4 = inlined_call_operand.vmem [shape: f32[32,128], index: 4, kind: input, shape index: {}]
  %s5 = inlined_call_operand.vmem [shape: f32[128,32], index: 5, kind: input, shape index: {}]
  %s6 = inlined_call_operand.vmem [shape: f32[5,32], index: 6, kind: input, shape index: {}]
  %s7 = inlined_call_operand.hbm [shape: f32[16,32], index: 7, kind: output, shape index: {}]
  %s8 = sld [smem:[#allocation0]]
  $region38: #{simple_transformer_encoder.1} parent=0
    _
  %s10 = ssub.s32 1, %s8
  %s11 = scalar_select 0, %s10, %s8
  $region1: #{simple_transformer_encoder.1} parent=0
    #allocation2 [shape = 'u8[8192]{0}', space=vmem, size = 0x2000, scoped, tag = 'output window, operand 0, single buffered']
    #allocation3 [shape = 's32[1]{0}', space=sflag, size = 0x4, scoped, tag = 'scoped memory for simple_transformer_encoder.1']
    %12 = vsyncpa [#allocation3], 0
    // Predicated region
    $region2: #{simple_transformer_encoder.1} parent=1 // pred_check
      _
    $region3: #{simple_transformer_encoder.1} parent=1 // pred_check_branch
      %14 = sbr.rel (0) target = $region5
    $region4: #{simple_transformer_encoder.1} parent=1 // pred_region
      _
    $region5: #{simple_transformer_encoder.1} parent=1 // pred_fallthru
      _
    // Predicated region
    $region6: #{simple_transformer_encoder.1} parent=1 // pred_check
      _
    $region7: #{simple_transformer_encoder.1} parent=1 // pred_check_branch
      %16 = sbr.rel (0) target = $region9
    $region8: #{simple_transformer_encoder.1} parent=1 // pred_region
      _
    $region9: #{simple_transformer_encoder.1} parent=1 // pred_fallthru
      _
    // Predicated region
    $region10: #{simple_transformer_encoder.1} parent=1 // pred_check
      _
    $region11: #{simple_transformer_encoder.1} parent=1 // pred_check_branch
      %18 = sbr.rel (0) target = $region13
    $region12: #{simple_transformer_encoder.1} parent=1 // pred_region
      _
    $region13: #{simple_transformer_encoder.1} parent=1 // pred_fallthru
      _
    // Predicated region
    $region14: #{simple_transformer_encoder.1} parent=1 // pred_check
      _
    $region15: #{simple_transformer_encoder.1} parent=1 // pred_check_branch
      %20 = sbr.rel (0) target = $region17
    $region16: #{simple_transformer_encoder.1} parent=1 // pred_region
      _
    $region17: #{simple_transformer_encoder.1} parent=1 // pred_fallthru
      _
    // Predicated region
    $region18: #{simple_transformer_encoder.1} parent=1 // pred_check
      _
    $region19: #{simple_transformer_encoder.1} parent=1 // pred_check_branch
      %22 = sbr.rel (0) target = $region21
    $region20: #{simple_transformer_encoder.1} parent=1 // pred_region
      _
    $region21: #{simple_transformer_encoder.1} parent=1 // pred_fallthru
      _
    // Predicated region
    $region22: #{simple_transformer_encoder.1} parent=1 // pred_check
      _
    $region23: #{simple_transformer_encoder.1} parent=1 // pred_check_branch
      %24 = sbr.rel (0) target = $region25
    $region24: #{simple_transformer_encoder.1} parent=1 // pred_region
      _
    $region25: #{simple_transformer_encoder.1} parent=1 // pred_fallthru
      _
    // Predicated region
    $region26: #{simple_transformer_encoder.1} parent=1 // pred_check
      _
    $region27: #{simple_transformer_encoder.1} parent=1 // pred_check_branch
      %26 = sbr.rel (0) target = $region29
    $region28: #{simple_transformer_encoder.1} parent=1 // pred_region
      _
    $region29: #{simple_transformer_encoder.1} parent=1 // pred_fallthru
      _
    %v27 = vld [vmem:[%s6] sm:$0x1f]
    %v28 = vld [vmem:[%s3] sm:$0x3]
    %v29 = vld [vmem:[%s2] sm:$0xff]
    %v30 = vld [vmem:[%s2 + $0x8] sm:$0xff]
    %v31 = vld [vmem:[%s2 + $0x10] sm:$0xff]
    %v32 = vld [vmem:[%s2 + $0x18] sm:$0xff]
    %v33 = vld [vmem:[%s0] sm:$0xff]
    %v34 = vld [vmem:[%s0 + $0x8] sm:$0xff]
    %v35 = vld [vmem:[%s1] sm:$0xff]
    %v36 = vld [vmem:[%s1 + $0x8] sm:$0xff]
    %v37 = vadd.f32 %v33, %v35
    %v38 = vadd.f32 %v34, %v36
    %v39 = vlaneseq
    %v40 = vshrl.u32 %v39, 7
    %v41 = vsub.s32 0, %v40
    %v42 = vrot.slane %v28, %v41
    %vm43 = vcmask 261120
    %v45 = vsel %vm43, %v37, 0
    %v48 = vsel %vm43, %v38, 0
    %50 = vmatprep.subr.mxu0 0.0
    %51 = vmatpush1.msra.mxu0 %v29
    %52 = vmatprep.subr.mxu0 0.0
    %53 = vmatpush1.msra.mxu0 %v30
    %54 = vmatprep.subr.mxu0 0.0
    %55 = vmatpush1.msra.mxu0 %v31
    %56 = vmatprep.subr.mxu0 0.0
    %57 = vmatpush1.msra.mxu0 %v32
    %58 = vmatprep.subr.mxu0 0.0
    %59 = vmatpush1.msra.mxu0 0.0
    %60 = vmatprep.subr.mxu0 0.0
    %61 = vmatpush1.msra.mxu0 0.0
    %62 = vmatprep.subr.mxu0 0.0
    %63 = vmatpush1.msra.mxu0 0.0
    %64 = vmatprep.subr.mxu0 0.0
    %65 = vmatpush1.msra.mxu0 0.0
    %66 = vmatprep.subr.mxu0 0.0
    %67 = vmatpush1.msra.mxu0 0.0
    %68 = vmatprep.subr.mxu0 0.0
    %69 = vmatpush1.msra.mxu0 0.0
    %70 = vmatprep.subr.mxu0 0.0
    %71 = vmatpush1.msra.mxu0 0.0
    %72 = vmatprep.subr.mxu0 0.0
    %73 = vmatpush1.msra.mxu0 0.0
    %74 = vmatprep.subr.mxu0 0.0
    %75 = vmatpush1.msra.mxu0 0.0
    %76 = vmatprep.subr.mxu0 0.0
    %77 = vmatpush1.msra.mxu0 0.0
    %78 = vmatprep.subr.mxu0 0.0
    %79 = vmatpush1.msra.mxu0 0.0
    %80 = vmatprep.subr.mxu0 0.0
    %81 = vmatpush1.msra.mxu0 0.0
    %82 = vmatprep.subr.mxu0 0.0
    %83 = vmatpush1.msra.mxu0 0.0
    %84 = vmatprep.subr.mxu0 0.0
    %85 = vmatpush1.msra.mxu0 0.0
    %86 = vmatprep.subr.mxu0 0.0
    %87 = vmatpush1.msra.mxu0 0.0
    %88 = vmatprep.subr.mxu0 0.0
    %89 = vmatpush1.msra.mxu0 0.0
    %90 = vmatprep.subr.mxu0 0.0
    %91 = vmatpush1.msra.mxu0 0.0
    %92 = vmatprep.subr.mxu0 0.0
    %93 = vmatpush1.msra.mxu0 0.0
    %94 = vmatprep.subr.mxu0 0.0
    %95 = vmatpush1.msra.mxu0 0.0
    %96 = vmatprep.subr.mxu0 0.0
    %97 = vmatpush1.msra.mxu0 0.0
    %98 = vmatprep.subr.mxu0 0.0
    %99 = vmatpush1.msra.mxu0 0.0
    %100 = vmatprep.subr.mxu0 0.0
    %101 = vmatpush1.msra.mxu0 0.0
    %102 = vmatprep.subr.mxu0 0.0
    %103 = vmatpush1.msra.mxu0 0.0
    %104 = vmatprep.subr.mxu0 0.0
    %105 = vmatpush1.msra.mxu0 0.0
    %106 = vmatprep.subr.mxu0 0.0
    %107 = vmatpush1.msra.mxu0 0.0
    %108 = vmatprep.subr.mxu0 0.0
    %109 = vmatpush1.msra.mxu0 0.0
    %110 = vmatprep.subr.mxu0 0.0
    %111 = vmatpush1.msra.mxu0 0.0
    %112 = vmatprep.subr.mxu0 0.0
    %113 = vmatpush1.msra.mxu0 0.0
    %114 = vmatprep.mubr.f32.mxu0 0.0
    %115 = vmatmul.mubr.f32.gmra.mrb[0].mxu0 %v45
    %v116 = vpop.f32.mrb[0].mxu0
    %v117 = vadd.f32 %v42, %v116
    %v118 = vpop.f32.mrb[0].mxu0
    %119 = vmatprep.mubr.f32.mxu0 0.0
    %120 = vmatmul.mubr.f32.gmra.mrb[0].mxu0 %v48
    %v121 = vpop.f32.mrb[0].mxu0
    %v122 = vadd.f32 %v42, %v121
    %v123 = vpop.f32.mrb[0].mxu0
    %124 = vdwg.mxu0
    %126 = vrot.lane.b32.xlu0 %v117, 96
    %v127 = vpop.permute.xlu0 %126
    %vm128 = vcmask 64512
    %v129 = vsel %vm128, %v117, 0
    %v131 = vsel %vm128, %v127, 0
    %133 = vmatprep.subr.mxu0 0.0
    %134 = vmatpush1.xpose.msra.mxu0 %v131
    %135 = vmatprep.subr.mxu0 0.0
    %136 = vmatpush1.xpose.msra.mxu0 0.0
    %137 = vmatprep.subr.mxu0 0.0
    %138 = vmatpush1.xpose.msra.mxu0 0.0
    %139 = vmatprep.subr.mxu0 0.0
    %140 = vmatpush1.xpose.msra.mxu0 0.0
    %141 = vmatprep.subr.mxu0 0.0
    %142 = vmatpush1.xpose.msra.mxu0 0.0
    %143 = vmatprep.subr.mxu0 0.0
    %144 = vmatpush1.xpose.msra.mxu0 0.0
    %145 = vmatprep.subr.mxu0 0.0
    %146 = vmatpush1.xpose.msra.mxu0 0.0
    %147 = vmatprep.subr.mxu0 0.0
    %148 = vmatpush1.xpose.msra.mxu0 0.0
    %149 = vmatprep.subr.mxu0 0.0
    %150 = vmatpush1.xpose.msra.mxu0 0.0
    %151 = vmatprep.subr.mxu0 0.0
    %152 = vmatpush1.xpose.msra.mxu0 0.0
    %153 = vmatprep.subr.mxu0 0.0
    %154 = vmatpush1.xpose.msra.mxu0 0.0
    %155 = vmatprep.subr.mxu0 0.0
    %156 = vmatpush1.xpose.msra.mxu0 0.0
    %157 = vmatprep.subr.mxu0 0.0
    %158 = vmatpush1.xpose.msra.mxu0 0.0
    %159 = vmatprep.subr.mxu0 0.0
    %160 = vmatpush1.xpose.msra.mxu0 0.0
    %161 = vmatprep.subr.mxu0 0.0
    %162 = vmatpush1.xpose.msra.mxu0 0.0
    %163 = vmatprep.subr.mxu0 0.0
    %164 = vmatpush1.xpose.msra.mxu0 0.0
    %165 = vmatprep.subr.mxu0 0.0
    %166 = vmatpush1.xpose.msra.mxu0 0.0
    %167 = vmatprep.subr.mxu0 0.0
    %168 = vmatpush1.xpose.msra.mxu0 0.0
    %169 = vmatprep.subr.mxu0 0.0
    %170 = vmatpush1.xpose.msra.mxu0 0.0
    %171 = vmatprep.subr.mxu0 0.0
    %172 = vmatpush1.xpose.msra.mxu0 0.0
    %173 = vmatprep.subr.mxu0 0.0
    %174 = vmatpush1.xpose.msra.mxu0 0.0
    %175 = vmatprep.subr.mxu0 0.0
    %176 = vmatpush1.xpose.msra.mxu0 0.0
    %177 = vmatprep.subr.mxu0 0.0
    %178 = vmatpush1.xpose.msra.mxu0 0.0
    %179 = vmatprep.subr.mxu0 0.0
    %180 = vmatpush1.xpose.msra.mxu0 0.0
    %181 = vmatprep.subr.mxu0 0.0
    %182 = vmatpush1.xpose.msra.mxu0 0.0
    %183 = vmatprep.subr.mxu0 0.0
    %184 = vmatpush1.xpose.msra.mxu0 0.0
    %185 = vmatprep.subr.mxu0 0.0
    %186 = vmatpush1.xpose.msra.mxu0 0.0
    %187 = vmatprep.subr.mxu0 0.0
    %188 = vmatpush1.xpose.msra.mxu0 0.0
    %189 = vmatprep.subr.mxu0 0.0
    %190 = vmatpush1.xpose.msra.mxu0 0.0
    %191 = vmatprep.subr.mxu0 0.0
    %192 = vmatpush1.xpose.msra.mxu0 0.0
    %193 = vmatprep.subr.mxu0 0.0
    %194 = vmatpush1.xpose.msra.mxu0 0.0
    %195 = vmatprep.subr.mxu0 0.0
    %196 = vmatpush1.xpose.msra.mxu0 0.0
    %197 = vmatprep.mubr.f32.mxu0 0.0
    %198 = vmatmul.mubr.f32.gmra.mrb[0].mxu0 %v129
    %v199 = vpop.f32.mrb[0].mxu0
    %v200 = vadd.f32 0.0, %v199
    %v201 = vpop.f32.mrb[0].mxu0
    %202 = vdwg.mxu0
    %204 = vrot.lane.b32.xlu0 %v122, 96
    %v205 = vpop.permute.xlu0 %204
    %v206 = vsel %vm128, %v122, 0
    %v208 = vsel %vm128, %v205, 0
    %210 = vmatprep.subr.mxu0 0.0
    %211 = vmatpush1.xpose.msra.mxu0 %v208
    %212 = vmatprep.subr.mxu0 0.0
    %213 = vmatpush1.xpose.msra.mxu0 0.0
    %214 = vmatprep.subr.mxu0 0.0
    %215 = vmatpush1.xpose.msra.mxu0 0.0
    %216 = vmatprep.subr.mxu0 0.0
    %217 = vmatpush1.xpose.msra.mxu0 0.0
    %218 = vmatprep.subr.mxu0 0.0
    %219 = vmatpush1.xpose.msra.mxu0 0.0
    %220 = vmatprep.subr.mxu0 0.0
    %221 = vmatpush1.xpose.msra.mxu0 0.0
    %222 = vmatprep.subr.mxu0 0.0
    %223 = vmatpush1.xpose.msra.mxu0 0.0
    %224 = vmatprep.subr.mxu0 0.0
    %225 = vmatpush1.xpose.msra.mxu0 0.0
    %226 = vmatprep.subr.mxu0 0.0
    %227 = vmatpush1.xpose.msra.mxu0 0.0
    %228 = vmatprep.subr.mxu0 0.0
    %229 = vmatpush1.xpose.msra.mxu0 0.0
    %230 = vmatprep.subr.mxu0 0.0
    %231 = vmatpush1.xpose.msra.mxu0 0.0
    %232 = vmatprep.subr.mxu0 0.0
    %233 = vmatpush1.xpose.msra.mxu0 0.0
    %234 = vmatprep.subr.mxu0 0.0
    %235 = vmatpush1.xpose.msra.mxu0 0.0
    %236 = vmatprep.subr.mxu0 0.0
    %237 = vmatpush1.xpose.msra.mxu0 0.0
    %238 = vmatprep.subr.mxu0 0.0
    %239 = vmatpush1.xpose.msra.mxu0 0.0
    %240 = vmatprep.subr.mxu0 0.0
    %241 = vmatpush1.xpose.msra.mxu0 0.0
    %242 = vmatprep.subr.mxu0 0.0
    %243 = vmatpush1.xpose.msra.mxu0 0.0
    %244 = vmatprep.subr.mxu0 0.0
    %245 = vmatpush1.xpose.msra.mxu0 0.0
    %246 = vmatprep.subr.mxu0 0.0
    %247 = vmatpush1.xpose.msra.mxu0 0.0
    %248 = vmatprep.subr.mxu0 0.0
    %249 = vmatpush1.xpose.msra.mxu0 0.0
    %250 = vmatprep.subr.mxu0 0.0
    %251 = vmatpush1.xpose.msra.mxu0 0.0
    %252 = vmatprep.subr.mxu0 0.0
    %253 = vmatpush1.xpose.msra.mxu0 0.0
    %254 = vmatprep.subr.mxu0 0.0
    %255 = vmatpush1.xpose.msra.mxu0 0.0
    %256 = vmatprep.subr.mxu0 0.0
    %257 = vmatpush1.xpose.msra.mxu0 0.0
    %258 = vmatprep.subr.mxu0 0.0
    %259 = vmatpush1.xpose.msra.mxu0 0.0
    %260 = vmatprep.subr.mxu0 0.0
    %261 = vmatpush1.xpose.msra.mxu0 0.0
    %262 = vmatprep.subr.mxu0 0.0
    %263 = vmatpush1.xpose.msra.mxu0 0.0
    %264 = vmatprep.subr.mxu0 0.0
    %265 = vmatpush1.xpose.msra.mxu0 0.0
    %266 = vmatprep.subr.mxu0 0.0
    %267 = vmatpush1.xpose.msra.mxu0 0.0
    %268 = vmatprep.subr.mxu0 0.0
    %269 = vmatpush1.xpose.msra.mxu0 0.0
    %270 = vmatprep.subr.mxu0 0.0
    %271 = vmatpush1.xpose.msra.mxu0 0.0
    %272 = vmatprep.subr.mxu0 0.0
    %273 = vmatpush1.xpose.msra.mxu0 0.0
    %274 = vmatprep.mubr.f32.mxu0 0.0
    %275 = vmatmul.mubr.f32.gmra.mrb[0].mxu0 %v206
    %v276 = vpop.f32.mrb[0].mxu0
    %v277 = vadd.f32 0.0, %v276
    %v278 = vpop.f32.mrb[0].mxu0
    %279 = vdwg.mxu0
    %v280 = vmul.f32 %v200, 0.35355338
    %v281 = vmul.f32 %v277, 0.35355338
    %v282 = vsel %vm128, %v280, -inf
    %283 = vmax.xlane.f32.xlu0 %v282
    %v284 = vpop.xlane.xlu0 %283
    %v285 = vsel %vm128, %v281, -inf
    %286 = vmax.xlane.f32.xlu0 %v285
    %v287 = vpop.xlane.xlu0 %286
    %v288 = vsub.f32 %v280, %v284
    %v289 = vsub.f32 %v281, %v287
    %v290 = vmul.f32 %v288, 1.442695
    %v291 = vpow.pop %v290
    %v292 = vmul.f32 %v289, 1.442695
    %v293 = vpow.pop %v292
    %v294 = vsel %vm128, %v291, 0.0
    %295 = vadd.xlane.f32.xlu0 %v294
    %v296 = vpop.xlane.xlu0 %295
    %v297 = vsel %vm128, %v293, 0.0
    %298 = vadd.xlane.f32.xlu0 %v297
    %v299 = vpop.xlane.xlu0 %298
    %v300 = vrcp.pop %v296
    %v301 = vrcp.pop %v299
    %v302 = vmul.f32 %v291, %v300
    %v303 = vmul.f32 %v293, %v301
    %304 = vrot.lane.b32.xlu0 %v117, 64
    %v305 = vpop.permute.xlu0 %304
    %v308 = vsel %vm128, %v302, 0
    %310 = vmatprep.subr.mxu0 0.0
    %311 = vmatpush1.msra.mxu0 %v305
    %312 = vmatprep.subr.mxu0 0.0
    %313 = vmatpush1.msra.mxu0 0.0
    %314 = vmatprep.subr.mxu0 0.0
    %315 = vmatpush1.msra.mxu0 0.0
    %316 = vmatprep.subr.mxu0 0.0
    %317 = vmatpush1.msra.mxu0 0.0
    %318 = vmatprep.subr.mxu0 0.0
    %319 = vmatpush1.msra.mxu0 0.0
    %320 = vmatprep.subr.mxu0 0.0
    %321 = vmatpush1.msra.mxu0 0.0
    %322 = vmatprep.subr.mxu0 0.0
    %323 = vmatpush1.msra.mxu0 0.0
    %324 = vmatprep.subr.mxu0 0.0
    %325 = vmatpush1.msra.mxu0 0.0
    %326 = vmatprep.subr.mxu0 0.0
    %327 = vmatpush1.msra.mxu0 0.0
    %328 = vmatprep.subr.mxu0 0.0
    %329 = vmatpush1.msra.mxu0 0.0
    %330 = vmatprep.subr.mxu0 0.0
    %331 = vmatpush1.msra.mxu0 0.0
    %332 = vmatprep.subr.mxu0 0.0
    %333 = vmatpush1.msra.mxu0 0.0
    %334 = vmatprep.subr.mxu0 0.0
    %335 = vmatpush1.msra.mxu0 0.0
    %336 = vmatprep.subr.mxu0 0.0
    %337 = vmatpush1.msra.mxu0 0.0
    %338 = vmatprep.subr.mxu0 0.0
    %339 = vmatpush1.msra.mxu0 0.0
    %340 = vmatprep.subr.mxu0 0.0
    %341 = vmatpush1.msra.mxu0 0.0
    %342 = vmatprep.subr.mxu0 0.0
    %343 = vmatpush1.msra.mxu0 0.0
    %344 = vmatprep.subr.mxu0 0.0
    %345 = vmatpush1.msra.mxu0 0.0
    %346 = vmatprep.subr.mxu0 0.0
    %347 = vmatpush1.msra.mxu0 0.0
    %348 = vmatprep.subr.mxu0 0.0
    %349 = vmatpush1.msra.mxu0 0.0
    %350 = vmatprep.subr.mxu0 0.0
    %351 = vmatpush1.msra.mxu0 0.0
    %352 = vmatprep.subr.mxu0 0.0
    %353 = vmatpush1.msra.mxu0 0.0
    %354 = vmatprep.subr.mxu0 0.0
    %355 = vmatpush1.msra.mxu0 0.0
    %356 = vmatprep.subr.mxu0 0.0
    %357 = vmatpush1.msra.mxu0 0.0
    %358 = vmatprep.subr.mxu0 0.0
    %359 = vmatpush1.msra.mxu0 0.0
    %360 = vmatprep.subr.mxu0 0.0
    %361 = vmatpush1.msra.mxu0 0.0
    %362 = vmatprep.subr.mxu0 0.0
    %363 = vmatpush1.msra.mxu0 0.0
    %364 = vmatprep.subr.mxu0 0.0
    %365 = vmatpush1.msra.mxu0 0.0
    %366 = vmatprep.subr.mxu0 0.0
    %367 = vmatpush1.msra.mxu0 0.0
    %368 = vmatprep.subr.mxu0 0.0
    %369 = vmatpush1.msra.mxu0 0.0
    %370 = vmatprep.subr.mxu0 0.0
    %371 = vmatpush1.msra.mxu0 0.0
    %372 = vmatprep.subr.mxu0 0.0
    %373 = vmatpush1.msra.mxu0 0.0
    %374 = vmatprep.mubr.f32.mxu0 0.0
    %375 = vmatmul.mubr.f32.gmra.mrb[0].mxu0 %v308
    %v376 = vpop.f32.mrb[0].mxu0
    %v377 = vadd.f32 0.0, %v376
    %v378 = vpop.f32.mrb[0].mxu0
    %379 = vdwg.mxu0
    %380 = vrot.lane.b32.xlu0 %v122, 64
    %v381 = vpop.permute.xlu0 %380
    %v384 = vsel %vm128, %v303, 0
    %386 = vmatprep.subr.mxu0 0.0
    %387 = vmatpush1.msra.mxu0 %v381
    %388 = vmatprep.subr.mxu0 0.0
    %389 = vmatpush1.msra.mxu0 0.0
    %390 = vmatprep.subr.mxu0 0.0
    %391 = vmatpush1.msra.mxu0 0.0
    %392 = vmatprep.subr.mxu0 0.0
    %393 = vmatpush1.msra.mxu0 0.0
    %394 = vmatprep.subr.mxu0 0.0
    %395 = vmatpush1.msra.mxu0 0.0
    %396 = vmatprep.subr.mxu0 0.0
    %397 = vmatpush1.msra.mxu0 0.0
    %398 = vmatprep.subr.mxu0 0.0
    %399 = vmatpush1.msra.mxu0 0.0
    %400 = vmatprep.subr.mxu0 0.0
    %401 = vmatpush1.msra.mxu0 0.0
    %402 = vmatprep.subr.mxu0 0.0
    %403 = vmatpush1.msra.mxu0 0.0
    %404 = vmatprep.subr.mxu0 0.0
    %405 = vmatpush1.msra.mxu0 0.0
    %406 = vmatprep.subr.mxu0 0.0
    %407 = vmatpush1.msra.mxu0 0.0
    %408 = vmatprep.subr.mxu0 0.0
    %409 = vmatpush1.msra.mxu0 0.0
    %410 = vmatprep.subr.mxu0 0.0
    %411 = vmatpush1.msra.mxu0 0.0
    %412 = vmatprep.subr.mxu0 0.0
    %413 = vmatpush1.msra.mxu0 0.0
    %414 = vmatprep.subr.mxu0 0.0
    %415 = vmatpush1.msra.mxu0 0.0
    %416 = vmatprep.subr.mxu0 0.0
    %417 = vmatpush1.msra.mxu0 0.0
    %418 = vmatprep.subr.mxu0 0.0
    %419 = vmatpush1.msra.mxu0 0.0
    %420 = vmatprep.subr.mxu0 0.0
    %421 = vmatpush1.msra.mxu0 0.0
    %422 = vmatprep.subr.mxu0 0.0
    %423 = vmatpush1.msra.mxu0 0.0
    %424 = vmatprep.subr.mxu0 0.0
    %425 = vmatpush1.msra.mxu0 0.0
    %426 = vmatprep.subr.mxu0 0.0
    %427 = vmatpush1.msra.mxu0 0.0
    %428 = vmatprep.subr.mxu0 0.0
    %429 = vmatpush1.msra.mxu0 0.0
    %430 = vmatprep.subr.mxu0 0.0
    %431 = vmatpush1.msra.mxu0 0.0
    %432 = vmatprep.subr.mxu0 0.0
    %433 = vmatpush1.msra.mxu0 0.0
    %434 = vmatprep.subr.mxu0 0.0
    %435 = vmatpush1.msra.mxu0 0.0
    %436 = vmatprep.subr.mxu0 0.0
    %437 = vmatpush1.msra.mxu0 0.0
    %438 = vmatprep.subr.mxu0 0.0
    %439 = vmatpush1.msra.mxu0 0.0
    %440 = vmatprep.subr.mxu0 0.0
    %441 = vmatpush1.msra.mxu0 0.0
    %442 = vmatprep.subr.mxu0 0.0
    %443 = vmatpush1.msra.mxu0 0.0
    %444 = vmatprep.subr.mxu0 0.0
    %445 = vmatpush1.msra.mxu0 0.0
    %446 = vmatprep.subr.mxu0 0.0
    %447 = vmatpush1.msra.mxu0 0.0
    %448 = vmatprep.subr.mxu0 0.0
    %449 = vmatpush1.msra.mxu0 0.0
    %450 = vmatprep.mubr.f32.mxu0 0.0
    %451 = vmatmul.mubr.f32.gmra.mrb[0].mxu0 %v384
    %v452 = vpop.f32.mrb[0].mxu0
    %v453 = vadd.f32 0.0, %v452
    %v454 = vpop.f32.mrb[0].mxu0
    %455 = vdwg.mxu0
    %456 = vrot.lane.b32.xlu0 %v117, 120
    %v457 = vpop.permute.xlu0 %456
    %458 = vrot.lane.b32.xlu0 %v117, 88
    %v459 = vpop.permute.xlu0 %458
    %v460 = vsel %vm128, %v457, 0
    %v462 = vsel %vm128, %v459, 0
    %464 = vmatprep.subr.mxu0 0.0
    %465 = vmatpush1.xpose.msra.mxu0 %v462
    %466 = vmatprep.subr.mxu0 0.0
    %467 = vmatpush1.xpose.msra.mxu0 0.0
    %468 = vmatprep.subr.mxu0 0.0
    %469 = vmatpush1.xpose.msra.mxu0 0.0
    %470 = vmatprep.subr.mxu0 0.0
    %471 = vmatpush1.xpose.msra.mxu0 0.0
    %472 = vmatprep.subr.mxu0 0.0
    %473 = vmatpush1.xpose.msra.mxu0 0.0
    %474 = vmatprep.subr.mxu0 0.0
    %475 = vmatpush1.xpose.msra.mxu0 0.0
    %476 = vmatprep.subr.mxu0 0.0
    %477 = vmatpush1.xpose.msra.mxu0 0.0
    %478 = vmatprep.subr.mxu0 0.0
    %479 = vmatpush1.xpose.msra.mxu0 0.0
    %480 = vmatprep.subr.mxu0 0.0
    %481 = vmatpush1.xpose.msra.mxu0 0.0
    %482 = vmatprep.subr.mxu0 0.0
    %483 = vmatpush1.xpose.msra.mxu0 0.0
    %484 = vmatprep.subr.mxu0 0.0
    %485 = vmatpush1.xpose.msra.mxu0 0.0
    %486 = vmatprep.subr.mxu0 0.0
    %487 = vmatpush1.xpose.msra.mxu0 0.0
    %488 = vmatprep.subr.mxu0 0.0
    %489 = vmatpush1.xpose.msra.mxu0 0.0
    %490 = vmatprep.subr.mxu0 0.0
    %491 = vmatpush1.xpose.msra.mxu0 0.0
    %492 = vmatprep.subr.mxu0 0.0
    %493 = vmatpush1.xpose.msra.mxu0 0.0
    %494 = vmatprep.subr.mxu0 0.0
    %495 = vmatpush1.xpose.msra.mxu0 0.0
    %496 = vmatprep.subr.mxu0 0.0
    %497 = vmatpush1.xpose.msra.mxu0 0.0
    %498 = vmatprep.subr.mxu0 0.0
    %499 = vmatpush1.xpose.msra.mxu0 0.0
    %500 = vmatprep.subr.mxu0 0.0
    %501 = vmatpush1.xpose.msra.mxu0 0.0
    %502 = vmatprep.subr.mxu0 0.0
    %503 = vmatpush1.xpose.msra.mxu0 0.0
    %504 = vmatprep.subr.mxu0 0.0
    %505 = vmatpush1.xpose.msra.mxu0 0.0
    %506 = vmatprep.subr.mxu0 0.0
    %507 = vmatpush1.xpose.msra.mxu0 0.0
    %508 = vmatprep.subr.mxu0 0.0
    %509 = vmatpush1.xpose.msra.mxu0 0.0
    %510 = vmatprep.subr.mxu0 0.0
    %511 = vmatpush1.xpose.msra.mxu0 0.0
    %512 = vmatprep.subr.mxu0 0.0
    %513 = vmatpush1.xpose.msra.mxu0 0.0
    %514 = vmatprep.subr.mxu0 0.0
    %515 = vmatpush1.xpose.msra.mxu0 0.0
    %516 = vmatprep.subr.mxu0 0.0
    %517 = vmatpush1.xpose.msra.mxu0 0.0
    %518 = vmatprep.subr.mxu0 0.0
    %519 = vmatpush1.xpose.msra.mxu0 0.0
    %520 = vmatprep.subr.mxu0 0.0
    %521 = vmatpush1.xpose.msra.mxu0 0.0
    %522 = vmatprep.subr.mxu0 0.0
    %523 = vmatpush1.xpose.msra.mxu0 0.0
    %524 = vmatprep.subr.mxu0 0.0
    %525 = vmatpush1.xpose.msra.mxu0 0.0
    %526 = vmatprep.subr.mxu0 0.0
    %527 = vmatpush1.xpose.msra.mxu0 0.0
    %528 = vmatprep.mubr.f32.mxu0 0.0
    %529 = vmatmul.mubr.f32.gmra.mrb[0].mxu0 %v460
    %v530 = vpop.f32.mrb[0].mxu0
    %v531 = vadd.f32 0.0, %v530
    %v532 = vpop.f32.mrb[0].mxu0
    %533 = vdwg.mxu0
    %534 = vrot.lane.b32.xlu0 %v122, 120
    %v535 = vpop.permute.xlu0 %534
    %536 = vrot.lane.b32.xlu0 %v122, 88
    %v537 = vpop.permute.xlu0 %536
    %v538 = vsel %vm128, %v535, 0
    %v540 = vsel %vm128, %v537, 0
    %542 = vmatprep.subr.mxu0 0.0
    %543 = vmatpush1.xpose.msra.mxu0 %v540
    %544 = vmatprep.subr.mxu0 0.0
    %545 = vmatpush1.xpose.msra.mxu0 0.0
    %546 = vmatprep.subr.mxu0 0.0
    %547 = vmatpush1.xpose.msra.mxu0 0.0
    %548 = vmatprep.subr.mxu0 0.0
    %549 = vmatpush1.xpose.msra.mxu0 0.0
    %550 = vmatprep.subr.mxu0 0.0
    %551 = vmatpush1.xpose.msra.mxu0 0.0
    %552 = vmatprep.subr.mxu0 0.0
    %553 = vmatpush1.xpose.msra.mxu0 0.0
    %554 = vmatprep.subr.mxu0 0.0
    %555 = vmatpush1.xpose.msra.mxu0 0.0
    %556 = vmatprep.subr.mxu0 0.0
    %557 = vmatpush1.xpose.msra.mxu0 0.0
    %558 = vmatprep.subr.mxu0 0.0
    %559 = vmatpush1.xpose.msra.mxu0 0.0
    %560 = vmatprep.subr.mxu0 0.0
    %561 = vmatpush1.xpose.msra.mxu0 0.0
    %562 = vmatprep.subr.mxu0 0.0
    %563 = vmatpush1.xpose.msra.mxu0 0.0
    %564 = vmatprep.subr.mxu0 0.0
    %565 = vmatpush1.xpose.msra.mxu0 0.0
    %566 = vmatprep.subr.mxu0 0.0
    %567 = vmatpush1.xpose.msra.mxu0 0.0
    %568 = vmatprep.subr.mxu0 0.0
    %569 = vmatpush1.xpose.msra.mxu0 0.0
    %570 = vmatprep.subr.mxu0 0.0
    %571 = vmatpush1.xpose.msra.mxu0 0.0
    %572 = vmatprep.subr.mxu0 0.0
    %573 = vmatpush1.xpose.msra.mxu0 0.0
    %574 = vmatprep.subr.mxu0 0.0
    %575 = vmatpush1.xpose.msra.mxu0 0.0
    %576 = vmatprep.subr.mxu0 0.0
    %577 = vmatpush1.xpose.msra.mxu0 0.0
    %578 = vmatprep.subr.mxu0 0.0
    %579 = vmatpush1.xpose.msra.mxu0 0.0
    %580 = vmatprep.subr.mxu0 0.0
    %581 = vmatpush1.xpose.msra.mxu0 0.0
    %582 = vmatprep.subr.mxu0 0.0
    %583 = vmatpush1.xpose.msra.mxu0 0.0
    %584 = vmatprep.subr.mxu0 0.0
    %585 = vmatpush1.xpose.msra.mxu0 0.0
    %586 = vmatprep.subr.mxu0 0.0
    %587 = vmatpush1.xpose.msra.mxu0 0.0
    %588 = vmatprep.subr.mxu0 0.0
    %589 = vmatpush1.xpose.msra.mxu0 0.0
    %590 = vmatprep.subr.mxu0 0.0
    %591 = vmatpush1.xpose.msra.mxu0 0.0
    %592 = vmatprep.subr.mxu0 0.0
    %593 = vmatpush1.xpose.msra.mxu0 0.0
    %594 = vmatprep.subr.mxu0 0.0
    %595 = vmatpush1.xpose.msra.mxu0 0.0
    %596 = vmatprep.subr.mxu0 0.0
    %597 = vmatpush1.xpose.msra.mxu0 0.0
    %598 = vmatprep.subr.mxu0 0.0
    %599 = vmatpush1.xpose.msra.mxu0 0.0
    %600 = vmatprep.subr.mxu0 0.0
    %601 = vmatpush1.xpose.msra.mxu0 0.0
    %602 = vmatprep.subr.mxu0 0.0
    %603 = vmatpush1.xpose.msra.mxu0 0.0
    %604 = vmatprep.subr.mxu0 0.0
    %605 = vmatpush1.xpose.msra.mxu0 0.0
    %606 = vmatprep.mubr.f32.mxu0 0.0
    %607 = vmatmul.mubr.f32.gmra.mrb[0].mxu0 %v538
    %v608 = vpop.f32.mrb[0].mxu0
    %v609 = vadd.f32 0.0, %v608
    %v610 = vpop.f32.mrb[0].mxu0
    %611 = vdwg.mxu0
    %v612 = vmul.f32 %v531, 0.35355338
    %v613 = vmul.f32 %v609, 0.35355338
    %v614 = vsel %vm128, %v612, -inf
    %615 = vmax.xlane.f32.xlu0 %v614
    %v616 = vpop.xlane.xlu0 %615
    %v617 = vsel %vm128, %v613, -inf
    %618 = vmax.xlane.f32.xlu0 %v617
    %v619 = vpop.xlane.xlu0 %618
    %v620 = vsub.f32 %v612, %v616
    %v621 = vsub.f32 %v613, %v619
    %v622 = vmul.f32 %v620, 1.442695
    %v623 = vpow.pop %v622
    %v624 = vmul.f32 %v621, 1.442695
    %v625 = vpow.pop %v624
    %v626 = vsel %vm128, %v623, 0.0
    %627 = vadd.xlane.f32.xlu0 %v626
    %v628 = vpop.xlane.xlu0 %627
    %v629 = vsel %vm128, %v625, 0.0
    %630 = vadd.xlane.f32.xlu0 %v629
    %v631 = vpop.xlane.xlu0 %630
    %v632 = vrcp.pop %v628
    %v633 = vrcp.pop %v631
    %v634 = vmul.f32 %v623, %v632
    %v635 = vmul.f32 %v625, %v633
    %636 = vrot.lane.b32.xlu0 %v117, 56
    %v637 = vpop.permute.xlu0 %636
    %v640 = vsel %vm128, %v634, 0
    %642 = vmatprep.subr.mxu0 0.0
    %643 = vmatpush1.msra.mxu0 %v637
    %644 = vmatprep.subr.mxu0 0.0
    %645 = vmatpush1.msra.mxu0 0.0
    %646 = vmatprep.subr.mxu0 0.0
    %647 = vmatpush1.msra.mxu0 0.0
    %648 = vmatprep.subr.mxu0 0.0
    %649 = vmatpush1.msra.mxu0 0.0
    %650 = vmatprep.subr.mxu0 0.0
    %651 = vmatpush1.msra.mxu0 0.0
    %652 = vmatprep.subr.mxu0 0.0
    %653 = vmatpush1.msra.mxu0 0.0
    %654 = vmatprep.subr.mxu0 0.0
    %655 = vmatpush1.msra.mxu0 0.0
    %656 = vmatprep.subr.mxu0 0.0
    %657 = vmatpush1.msra.mxu0 0.0
    %658 = vmatprep.subr.mxu0 0.0
    %659 = vmatpush1.msra.mxu0 0.0
    %660 = vmatprep.subr.mxu0 0.0
    %661 = vmatpush1.msra.mxu0 0.0
    %662 = vmatprep.subr.mxu0 0.0
    %663 = vmatpush1.msra.mxu0 0.0
    %664 = vmatprep.subr.mxu0 0.0
    %665 = vmatpush1.msra.mxu0 0.0
    %666 = vmatprep.subr.mxu0 0.0
    %667 = vmatpush1.msra.mxu0 0.0
    %668 = vmatprep.subr.mxu0 0.0
    %669 = vmatpush1.msra.mxu0 0.0
    %670 = vmatprep.subr.mxu0 0.0
    %671 = vmatpush1.msra.mxu0 0.0
    %672 = vmatprep.subr.mxu0 0.0
    %673 = vmatpush1.msra.mxu0 0.0
    %674 = vmatprep.subr.mxu0 0.0
    %675 = vmatpush1.msra.mxu0 0.0
    %676 = vmatprep.subr.mxu0 0.0
    %677 = vmatpush1.msra.mxu0 0.0
    %678 = vmatprep.subr.mxu0 0.0
    %679 = vmatpush1.msra.mxu0 0.0
    %680 = vmatprep.subr.mxu0 0.0
    %681 = vmatpush1.msra.mxu0 0.0
    %682 = vmatprep.subr.mxu0 0.0
    %683 = vmatpush1.msra.mxu0 0.0
    %684 = vmatprep.subr.mxu0 0.0
    %685 = vmatpush1.msra.mxu0 0.0
    %686 = vmatprep.subr.mxu0 0.0
    %687 = vmatpush1.msra.mxu0 0.0
    %688 = vmatprep.subr.mxu0 0.0
    %689 = vmatpush1.msra.mxu0 0.0
    %690 = vmatprep.subr.mxu0 0.0
    %691 = vmatpush1.msra.mxu0 0.0
    %692 = vmatprep.subr.mxu0 0.0
    %693 = vmatpush1.msra.mxu0 0.0
    %694 = vmatprep.subr.mxu0 0.0
    %695 = vmatpush1.msra.mxu0 0.0
    %696 = vmatprep.subr.mxu0 0.0
    %697 = vmatpush1.msra.mxu0 0.0
    %698 = vmatprep.subr.mxu0 0.0
    %699 = vmatpush1.msra.mxu0 0.0
    %700 = vmatprep.subr.mxu0 0.0
    %701 = vmatpush1.msra.mxu0 0.0
    %702 = vmatprep.subr.mxu0 0.0
    %703 = vmatpush1.msra.mxu0 0.0
    %704 = vmatprep.subr.mxu0 0.0
    %705 = vmatpush1.msra.mxu0 0.0
    %706 = vmatprep.mubr.f32.mxu0 0.0
    %707 = vmatmul.mubr.f32.gmra.mrb[0].mxu0 %v640
    %v708 = vpop.f32.mrb[0].mxu0
    %v709 = vadd.f32 0.0, %v708
    %v710 = vpop.f32.mrb[0].mxu0
    %711 = vdwg.mxu0
    %712 = vrot.lane.b32.xlu0 %v122, 56
    %v713 = vpop.permute.xlu0 %712
    %v716 = vsel %vm128, %v635, 0
    %718 = vmatprep.subr.mxu0 0.0
    %719 = vmatpush1.msra.mxu0 %v713
    %720 = vmatprep.subr.mxu0 0.0
    %721 = vmatpush1.msra.mxu0 0.0
    %722 = vmatprep.subr.mxu0 0.0
    %723 = vmatpush1.msra.mxu0 0.0
    %724 = vmatprep.subr.mxu0 0.0
    %725 = vmatpush1.msra.mxu0 0.0
    %726 = vmatprep.subr.mxu0 0.0
    %727 = vmatpush1.msra.mxu0 0.0
    %728 = vmatprep.subr.mxu0 0.0
    %729 = vmatpush1.msra.mxu0 0.0
    %730 = vmatprep.subr.mxu0 0.0
    %731 = vmatpush1.msra.mxu0 0.0
    %732 = vmatprep.subr.mxu0 0.0
    %733 = vmatpush1.msra.mxu0 0.0
    %734 = vmatprep.subr.mxu0 0.0
    %735 = vmatpush1.msra.mxu0 0.0
    %736 = vmatprep.subr.mxu0 0.0
    %737 = vmatpush1.msra.mxu0 0.0
    %738 = vmatprep.subr.mxu0 0.0
    %739 = vmatpush1.msra.mxu0 0.0
    %740 = vmatprep.subr.mxu0 0.0
    %741 = vmatpush1.msra.mxu0 0.0
    %742 = vmatprep.subr.mxu0 0.0
    %743 = vmatpush1.msra.mxu0 0.0
    %744 = vmatprep.subr.mxu0 0.0
    %745 = vmatpush1.msra.mxu0 0.0
    %746 = vmatprep.subr.mxu0 0.0
    %747 = vmatpush1.msra.mxu0 0.0
    %748 = vmatprep.subr.mxu0 0.0
    %749 = vmatpush1.msra.mxu0 0.0
    %750 = vmatprep.subr.mxu0 0.0
    %751 = vmatpush1.msra.mxu0 0.0
    %752 = vmatprep.subr.mxu0 0.0
    %753 = vmatpush1.msra.mxu0 0.0
    %754 = vmatprep.subr.mxu0 0.0
    %755 = vmatpush1.msra.mxu0 0.0
    %756 = vmatprep.subr.mxu0 0.0
    %757 = vmatpush1.msra.mxu0 0.0
    %758 = vmatprep.subr.mxu0 0.0
    %759 = vmatpush1.msra.mxu0 0.0
    %760 = vmatprep.subr.mxu0 0.0
    %761 = vmatpush1.msra.mxu0 0.0
    %762 = vmatprep.subr.mxu0 0.0
    %763 = vmatpush1.msra.mxu0 0.0
    %764 = vmatprep.subr.mxu0 0.0
    %765 = vmatpush1.msra.mxu0 0.0
    %766 = vmatprep.subr.mxu0 0.0
    %767 = vmatpush1.msra.mxu0 0.0
    %768 = vmatprep.subr.mxu0 0.0
    %769 = vmatpush1.msra.mxu0 0.0
    %770 = vmatprep.subr.mxu0 0.0
    %771 = vmatpush1.msra.mxu0 0.0
    %772 = vmatprep.subr.mxu0 0.0
    %773 = vmatpush1.msra.mxu0 0.0
    %774 = vmatprep.subr.mxu0 0.0
    %775 = vmatpush1.msra.mxu0 0.0
    %776 = vmatprep.subr.mxu0 0.0
    %777 = vmatpush1.msra.mxu0 0.0
    %778 = vmatprep.subr.mxu0 0.0
    %779 = vmatpush1.msra.mxu0 0.0
    %780 = vmatprep.subr.mxu0 0.0
    %781 = vmatpush1.msra.mxu0 0.0
    %782 = vmatprep.mubr.f32.mxu0 0.0
    %783 = vmatmul.mubr.f32.gmra.mrb[0].mxu0 %v716
    %v784 = vpop.f32.mrb[0].mxu0
    %v785 = vadd.f32 0.0, %v784
    %v786 = vpop.f32.mrb[0].mxu0
    %787 = vdwg.mxu0
    %789 = vrot.lane.b32.xlu0 %v30, 32
    %v790 = vpop.permute.xlu0 %789
    %v793 = vsel %vm128, %v709, 0
    %v796 = vsel %vm128, %v785, 0
    %798 = vmatprep.subr.mxu0 0.0
    %799 = vmatpush1.msra.mxu0 %v790
    %800 = vmatprep.subr.mxu0 0.0
    %801 = vmatpush1.msra.mxu0 0.0
    %802 = vmatprep.subr.mxu0 0.0
    %803 = vmatpush1.msra.mxu0 0.0
    %804 = vmatprep.subr.mxu0 0.0
    %805 = vmatpush1.msra.mxu0 0.0
    %806 = vmatprep.subr.mxu0 0.0
    %807 = vmatpush1.msra.mxu0 0.0
    %808 = vmatprep.subr.mxu0 0.0
    %809 = vmatpush1.msra.mxu0 0.0
    %810 = vmatprep.subr.mxu0 0.0
    %811 = vmatpush1.msra.mxu0 0.0
    %812 = vmatprep.subr.mxu0 0.0
    %813 = vmatpush1.msra.mxu0 0.0
    %814 = vmatprep.subr.mxu0 0.0
    %815 = vmatpush1.msra.mxu0 0.0
    %816 = vmatprep.subr.mxu0 0.0
    %817 = vmatpush1.msra.mxu0 0.0
    %818 = vmatprep.subr.mxu0 0.0
    %819 = vmatpush1.msra.mxu0 0.0
    %820 = vmatprep.subr.mxu0 0.0
    %821 = vmatpush1.msra.mxu0 0.0
    %822 = vmatprep.subr.mxu0 0.0
    %823 = vmatpush1.msra.mxu0 0.0
    %824 = vmatprep.subr.mxu0 0.0
    %825 = vmatpush1.msra.mxu0 0.0
    %826 = vmatprep.subr.mxu0 0.0
    %827 = vmatpush1.msra.mxu0 0.0
    %828 = vmatprep.subr.mxu0 0.0
    %829 = vmatpush1.msra.mxu0 0.0
    %830 = vmatprep.subr.mxu0 0.0
    %831 = vmatpush1.msra.mxu0 0.0
    %832 = vmatprep.subr.mxu0 0.0
    %833 = vmatpush1.msra.mxu0 0.0
    %834 = vmatprep.subr.mxu0 0.0
    %835 = vmatpush1.msra.mxu0 0.0
    %836 = vmatprep.subr.mxu0 0.0
    %837 = vmatpush1.msra.mxu0 0.0
    %838 = vmatprep.subr.mxu0 0.0
    %839 = vmatpush1.msra.mxu0 0.0
    %840 = vmatprep.subr.mxu0 0.0
    %841 = vmatpush1.msra.mxu0 0.0
    %842 = vmatprep.subr.mxu0 0.0
    %843 = vmatpush1.msra.mxu0 0.0
    %844 = vmatprep.subr.mxu0 0.0
    %845 = vmatpush1.msra.mxu0 0.0
    %846 = vmatprep.subr.mxu0 0.0
    %847 = vmatpush1.msra.mxu0 0.0
    %848 = vmatprep.subr.mxu0 0.0
    %849 = vmatpush1.msra.mxu0 0.0
    %850 = vmatprep.subr.mxu0 0.0
    %851 = vmatpush1.msra.mxu0 0.0
    %852 = vmatprep.subr.mxu0 0.0
    %853 = vmatpush1.msra.mxu0 0.0
    %854 = vmatprep.subr.mxu0 0.0
    %855 = vmatpush1.msra.mxu0 0.0
    %856 = vmatprep.subr.mxu0 0.0
    %857 = vmatpush1.msra.mxu0 0.0
    %858 = vmatprep.subr.mxu0 0.0
    %859 = vmatpush1.msra.mxu0 0.0
    %860 = vmatprep.subr.mxu0 0.0
    %861 = vmatpush1.msra.mxu0 0.0
    %862 = vmatprep.mubr.f32.mxu0 0.0
    %863 = vmatmul.mubr.f32.gmra.mrb[0].mxu0 %v793
    %v864 = vpop.f32.mrb[0].mxu0
    %v865 = vadd.f32 0.0, %v864
    %v866 = vpop.f32.mrb[0].mxu0
    %867 = vmatprep.mubr.f32.mxu0 0.0
    %868 = vmatmul.mubr.f32.gmra.mrb[0].mxu0 %v796
    %v869 = vpop.f32.mrb[0].mxu0
    %v870 = vadd.f32 0.0, %v869
    %v871 = vpop.f32.mrb[0].mxu0
    %872 = vdwg.mxu0
    %874 = vrot.lane.b32.xlu0 %v29, 32
    %v875 = vpop.permute.xlu0 %874
    %v878 = vsel %vm128, %v377, 0
    %v881 = vsel %vm128, %v453, 0
    %883 = vmatprep.subr.mxu0 0.0
    %884 = vmatpush1.msra.mxu0 %v875
    %885 = vmatprep.subr.mxu0 0.0
    %886 = vmatpush1.msra.mxu0 0.0
    %887 = vmatprep.subr.mxu0 0.0
    %888 = vmatpush1.msra.mxu0 0.0
    %889 = vmatprep.subr.mxu0 0.0
    %890 = vmatpush1.msra.mxu0 0.0
    %891 = vmatprep.subr.mxu0 0.0
    %892 = vmatpush1.msra.mxu0 0.0
    %893 = vmatprep.subr.mxu0 0.0
    %894 = vmatpush1.msra.mxu0 0.0
    %895 = vmatprep.subr.mxu0 0.0
    %896 = vmatpush1.msra.mxu0 0.0
    %897 = vmatprep.subr.mxu0 0.0
    %898 = vmatpush1.msra.mxu0 0.0
    %899 = vmatprep.subr.mxu0 0.0
    %900 = vmatpush1.msra.mxu0 0.0
    %901 = vmatprep.subr.mxu0 0.0
    %902 = vmatpush1.msra.mxu0 0.0
    %903 = vmatprep.subr.mxu0 0.0
    %904 = vmatpush1.msra.mxu0 0.0
    %905 = vmatprep.subr.mxu0 0.0
    %906 = vmatpush1.msra.mxu0 0.0
    %907 = vmatprep.subr.mxu0 0.0
    %908 = vmatpush1.msra.mxu0 0.0
    %909 = vmatprep.subr.mxu0 0.0
    %910 = vmatpush1.msra.mxu0 0.0
    %911 = vmatprep.subr.mxu0 0.0
    %912 = vmatpush1.msra.mxu0 0.0
    %913 = vmatprep.subr.mxu0 0.0
    %914 = vmatpush1.msra.mxu0 0.0
    %915 = vmatprep.subr.mxu0 0.0
    %916 = vmatpush1.msra.mxu0 0.0
    %917 = vmatprep.subr.mxu0 0.0
    %918 = vmatpush1.msra.mxu0 0.0
    %919 = vmatprep.subr.mxu0 0.0
    %920 = vmatpush1.msra.mxu0 0.0
    %921 = vmatprep.subr.mxu0 0.0
    %922 = vmatpush1.msra.mxu0 0.0
    %923 = vmatprep.subr.mxu0 0.0
    %924 = vmatpush1.msra.mxu0 0.0
    %925 = vmatprep.subr.mxu0 0.0
    %926 = vmatpush1.msra.mxu0 0.0
    %927 = vmatprep.subr.mxu0 0.0
    %928 = vmatpush1.msra.mxu0 0.0
    %929 = vmatprep.subr.mxu0 0.0
    %930 = vmatpush1.msra.mxu0 0.0
    %931 = vmatprep.subr.mxu0 0.0
    %932 = vmatpush1.msra.mxu0 0.0
    %933 = vmatprep.subr.mxu0 0.0
    %934 = vmatpush1.msra.mxu0 0.0
    %935 = vmatprep.subr.mxu0 0.0
    %936 = vmatpush1.msra.mxu0 0.0
    %937 = vmatprep.subr.mxu0 0.0
    %938 = vmatpush1.msra.mxu0 0.0
    %939 = vmatprep.subr.mxu0 0.0
    %940 = vmatpush1.msra.mxu0 0.0
    %941 = vmatprep.subr.mxu0 0.0
    %942 = vmatpush1.msra.mxu0 0.0
    %943 = vmatprep.subr.mxu0 0.0
    %944 = vmatpush1.msra.mxu0 0.0
    %945 = vmatprep.subr.mxu0 0.0
    %946 = vmatpush1.msra.mxu0 0.0
    %947 = vmatprep.mubr.f32.mxu0 0.0
    %948 = vmatmul.mubr.f32.gmra.mrb[0].mxu0 %v878
    %v949 = vpop.f32.mrb[0].mxu0
    %v950 = vadd.f32 %v865, %v949
    %v951 = vpop.f32.mrb[0].mxu0
    %952 = vmatprep.mubr.f32.mxu0 0.0
    %953 = vmatmul.mubr.f32.gmra.mrb[0].mxu0 %v881
    %v954 = vpop.f32.mrb[0].mxu0
    %v955 = vadd.f32 %v870, %v954
    %v956 = vpop.f32.mrb[0].mxu0
    %957 = vdwg.mxu0
    %958 = vrot.lane.b32.xlu0 %v117, 112
    %v959 = vpop.permute.xlu0 %958
    %960 = vrot.lane.b32.xlu0 %v117, 80
    %v961 = vpop.permute.xlu0 %960
    %v962 = vsel %vm128, %v959, 0
    %v964 = vsel %vm128, %v961, 0
    %966 = vmatprep.subr.mxu0 0.0
    %967 = vmatpush1.xpose.msra.mxu0 %v964
    %968 = vmatprep.subr.mxu0 0.0
    %969 = vmatpush1.xpose.msra.mxu0 0.0
    %970 = vmatprep.subr.mxu0 0.0
    %971 = vmatpush1.xpose.msra.mxu0 0.0
    %972 = vmatprep.subr.mxu0 0.0
    %973 = vmatpush1.xpose.msra.mxu0 0.0
    %974 = vmatprep.subr.mxu0 0.0
    %975 = vmatpush1.xpose.msra.mxu0 0.0
    %976 = vmatprep.subr.mxu0 0.0
    %977 = vmatpush1.xpose.msra.mxu0 0.0
    %978 = vmatprep.subr.mxu0 0.0
    %979 = vmatpush1.xpose.msra.mxu0 0.0
    %980 = vmatprep.subr.mxu0 0.0
    %981 = vmatpush1.xpose.msra.mxu0 0.0
    %982 = vmatprep.subr.mxu0 0.0
    %983 = vmatpush1.xpose.msra.mxu0 0.0
    %984 = vmatprep.subr.mxu0 0.0
    %985 = vmatpush1.xpose.msra.mxu0 0.0
    %986 = vmatprep.subr.mxu0 0.0
    %987 = vmatpush1.xpose.msra.mxu0 0.0
    %988 = vmatprep.subr.mxu0 0.0
    %989 = vmatpush1.xpose.msra.mxu0 0.0
    %990 = vmatprep.subr.mxu0 0.0
    %991 = vmatpush1.xpose.msra.mxu0 0.0
    %992 = vmatprep.subr.mxu0 0.0
    %993 = vmatpush1.xpose.msra.mxu0 0.0
    %994 = vmatprep.subr.mxu0 0.0
    %995 = vmatpush1.xpose.msra.mxu0 0.0
    %996 = vmatprep.subr.mxu0 0.0
    %997 = vmatpush1.xpose.msra.mxu0 0.0
    %998 = vmatprep.subr.mxu0 0.0
    %999 = vmatpush1.xpose.msra.mxu0 0.0
    %1000 = vmatprep.subr.mxu0 0.0
    %1001 = vmatpush1.xpose.msra.mxu0 0.0
    %1002 = vmatprep.subr.mxu0 0.0
    %1003 = vmatpush1.xpose.msra.mxu0 0.0
    %1004 = vmatprep.subr.mxu0 0.0
    %1005 = vmatpush1.xpose.msra.mxu0 0.0
    %1006 = vmatprep.subr.mxu0 0.0
    %1007 = vmatpush1.xpose.msra.mxu0 0.0
    %1008 = vmatprep.subr.mxu0 0.0
    %1009 = vmatpush1.xpose.msra.mxu0 0.0
    %1010 = vmatprep.subr.mxu0 0.0
    %1011 = vmatpush1.xpose.msra.mxu0 0.0
    %1012 = vmatprep.subr.mxu0 0.0
    %1013 = vmatpush1.xpose.msra.mxu0 0.0
    %1014 = vmatprep.subr.mxu0 0.0
    %1015 = vmatpush1.xpose.msra.mxu0 0.0
    %1016 = vmatprep.subr.mxu0 0.0
    %1017 = vmatpush1.xpose.msra.mxu0 0.0
    %1018 = vmatprep.subr.mxu0 0.0
    %1019 = vmatpush1.xpose.msra.mxu0 0.0
    %1020 = vmatprep.subr.mxu0 0.0
    %1021 = vmatpush1.xpose.msra.mxu0 0.0
    %1022 = vmatprep.subr.mxu0 0.0
    %1023 = vmatpush1.xpose.msra.mxu0 0.0
    %1024 = vmatprep.subr.mxu0 0.0
    %1025 = vmatpush1.xpose.msra.mxu0 0.0
    %1026 = vmatprep.subr.mxu0 0.0
    %1027 = vmatpush1.xpose.msra.mxu0 0.0
    %1028 = vmatprep.subr.mxu0 0.0
    %1029 = vmatpush1.xpose.msra.mxu0 0.0
    %1030 = vmatprep.mubr.f32.mxu0 0.0
    %1031 = vmatmul.mubr.f32.gmra.mrb[0].mxu0 %v962
    %v1032 = vpop.f32.mrb[0].mxu0
    %v1033 = vadd.f32 0.0, %v1032
    %v1034 = vpop.f32.mrb[0].mxu0
    %1035 = vdwg.mxu0
    %1036 = vrot.lane.b32.xlu0 %v122, 112
    %v1037 = vpop.permute.xlu0 %1036
    %1038 = vrot.lane.b32.xlu0 %v122, 80
    %v1039 = vpop.permute.xlu0 %1038
    %v1040 = vsel %vm128, %v1037, 0
    %v1042 = vsel %vm128, %v1039, 0
    %1044 = vmatprep.subr.mxu0 0.0
    %1045 = vmatpush1.xpose.msra.mxu0 %v1042
    %1046 = vmatprep.subr.mxu0 0.0
    %1047 = vmatpush1.xpose.msra.mxu0 0.0
    %1048 = vmatprep.subr.mxu0 0.0
    %1049 = vmatpush1.xpose.msra.mxu0 0.0
    %1050 = vmatprep.subr.mxu0 0.0
    %1051 = vmatpush1.xpose.msra.mxu0 0.0
    %1052 = vmatprep.subr.mxu0 0.0
    %1053 = vmatpush1.xpose.msra.mxu0 0.0
    %1054 = vmatprep.subr.mxu0 0.0
    %1055 = vmatpush1.xpose.msra.mxu0 0.0
    %1056 = vmatprep.subr.mxu0 0.0
    %1057 = vmatpush1.xpose.msra.mxu0 0.0
    %1058 = vmatprep.subr.mxu0 0.0
    %1059 = vmatpush1.xpose.msra.mxu0 0.0
    %1060 = vmatprep.subr.mxu0 0.0
    %1061 = vmatpush1.xpose.msra.mxu0 0.0
    %1062 = vmatprep.subr.mxu0 0.0
    %1063 = vmatpush1.xpose.msra.mxu0 0.0
    %1064 = vmatprep.subr.mxu0 0.0
    %1065 = vmatpush1.xpose.msra.mxu0 0.0
    %1066 = vmatprep.subr.mxu0 0.0
    %1067 = vmatpush1.xpose.msra.mxu0 0.0
    %1068 = vmatprep.subr.mxu0 0.0
    %1069 = vmatpush1.xpose.msra.mxu0 0.0
    %1070 = vmatprep.subr.mxu0 0.0
    %1071 = vmatpush1.xpose.msra.mxu0 0.0
    %1072 = vmatprep.subr.mxu0 0.0
    %1073 = vmatpush1.xpose.msra.mxu0 0.0
    %1074 = vmatprep.subr.mxu0 0.0
    %1075 = vmatpush1.xpose.msra.mxu0 0.0
    %1076 = vmatprep.subr.mxu0 0.0
    %1077 = vmatpush1.xpose.msra.mxu0 0.0
    %1078 = vmatprep.subr.mxu0 0.0
    %1079 = vmatpush1.xpose.msra.mxu0 0.0
    %1080 = vmatprep.subr.mxu0 0.0
    %1081 = vmatpush1.xpose.msra.mxu0 0.0
    %1082 = vmatprep.subr.mxu0 0.0
    %1083 = vmatpush1.xpose.msra.mxu0 0.0
    %1084 = vmatprep.subr.mxu0 0.0
    %1085 = vmatpush1.xpose.msra.mxu0 0.0
    %1086 = vmatprep.subr.mxu0 0.0
    %1087 = vmatpush1.xpose.msra.mxu0 0.0
    %1088 = vmatprep.subr.mxu0 0.0
    %1089 = vmatpush1.xpose.msra.mxu0 0.0
    %1090 = vmatprep.subr.mxu0 0.0
    %1091 = vmatpush1.xpose.msra.mxu0 0.0
    %1092 = vmatprep.subr.mxu0 0.0
    %1093 = vmatpush1.xpose.msra.mxu0 0.0
    %1094 = vmatprep.subr.mxu0 0.0
    %1095 = vmatpush1.xpose.msra.mxu0 0.0
    %1096 = vmatprep.subr.mxu0 0.0
    %1097 = vmatpush1.xpose.msra.mxu0 0.0
    %1098 = vmatprep.subr.mxu0 0.0
    %1099 = vmatpush1.xpose.msra.mxu0 0.0
    %1100 = vmatprep.subr.mxu0 0.0
    %1101 = vmatpush1.xpose.msra.mxu0 0.0
    %1102 = vmatprep.subr.mxu0 0.0
    %1103 = vmatpush1.xpose.msra.mxu0 0.0
    %1104 = vmatprep.subr.mxu0 0.0
    %1105 = vmatpush1.xpose.msra.mxu0 0.0
    %1106 = vmatprep.subr.mxu0 0.0
    %1107 = vmatpush1.xpose.msra.mxu0 0.0
    %1108 = vmatprep.mubr.f32.mxu0 0.0
    %1109 = vmatmul.mubr.f32.gmra.mrb[0].mxu0 %v1040
    %v1110 = vpop.f32.mrb[0].mxu0
    %v1111 = vadd.f32 0.0, %v1110
    %v1112 = vpop.f32.mrb[0].mxu0
    %1113 = vdwg.mxu0
    %v1114 = vmul.f32 %v1033, 0.35355338
    %v1115 = vmul.f32 %v1111, 0.35355338
    %v1116 = vsel %vm128, %v1114, -inf
    %1117 = vmax.xlane.f32.xlu0 %v1116
    %v1118 = vpop.xlane.xlu0 %1117
    %v1119 = vsel %vm128, %v1115, -inf
    %1120 = vmax.xlane.f32.xlu0 %v1119
    %v1121 = vpop.xlane.xlu0 %1120
    %v1122 = vsub.f32 %v1114, %v1118
    %v1123 = vsub.f32 %v1115, %v1121
    %v1124 = vmul.f32 %v1122, 1.442695
    %v1125 = vpow.pop %v1124
    %v1126 = vmul.f32 %v1123, 1.442695
    %v1127 = vpow.pop %v1126
    %v1128 = vsel %vm128, %v1125, 0.0
    %1129 = vadd.xlane.f32.xlu0 %v1128
    %v1130 = vpop.xlane.xlu0 %1129
    %v1131 = vsel %vm128, %v1127, 0.0
    %1132 = vadd.xlane.f32.xlu0 %v1131
    %v1133 = vpop.xlane.xlu0 %1132
    %v1134 = vrcp.pop %v1130
    %v1135 = vrcp.pop %v1133
    %v1136 = vmul.f32 %v1125, %v1134
    %v1137 = vmul.f32 %v1127, %v1135
    %1138 = vrot.lane.b32.xlu0 %v117, 48
    %v1139 = vpop.permute.xlu0 %1138
    %v1142 = vsel %vm128, %v1136, 0
    %1144 = vmatprep.subr.mxu0 0.0
    %1145 = vmatpush1.msra.mxu0 %v1139
    %1146 = vmatprep.subr.mxu0 0.0
    %1147 = vmatpush1.msra.mxu0 0.0
    %1148 = vmatprep.subr.mxu0 0.0
    %1149 = vmatpush1.msra.mxu0 0.0
    %1150 = vmatprep.subr.mxu0 0.0
    %1151 = vmatpush1.msra.mxu0 0.0
    %1152 = vmatprep.subr.mxu0 0.0
    %1153 = vmatpush1.msra.mxu0 0.0
    %1154 = vmatprep.subr.mxu0 0.0
    %1155 = vmatpush1.msra.mxu0 0.0
    %1156 = vmatprep.subr.mxu0 0.0
    %1157 = vmatpush1.msra.mxu0 0.0
    %1158 = vmatprep.subr.mxu0 0.0
    %1159 = vmatpush1.msra.mxu0 0.0
    %1160 = vmatprep.subr.mxu0 0.0
    %1161 = vmatpush1.msra.mxu0 0.0
    %1162 = vmatprep.subr.mxu0 0.0
    %1163 = vmatpush1.msra.mxu0 0.0
    %1164 = vmatprep.subr.mxu0 0.0
    %1165 = vmatpush1.msra.mxu0 0.0
    %1166 = vmatprep.subr.mxu0 0.0
    %1167 = vmatpush1.msra.mxu0 0.0
    %1168 = vmatprep.subr.mxu0 0.0
    %1169 = vmatpush1.msra.mxu0 0.0
    %1170 = vmatprep.subr.mxu0 0.0
    %1171 = vmatpush1.msra.mxu0 0.0
    %1172 = vmatprep.subr.mxu0 0.0
    %1173 = vmatpush1.msra.mxu0 0.0
    %1174 = vmatprep.subr.mxu0 0.0
    %1175 = vmatpush1.msra.mxu0 0.0
    %1176 = vmatprep.subr.mxu0 0.0
    %1177 = vmatpush1.msra.mxu0 0.0
    %1178 = vmatprep.subr.mxu0 0.0
    %1179 = vmatpush1.msra.mxu0 0.0
    %1180 = vmatprep.subr.mxu0 0.0
    %1181 = vmatpush1.msra.mxu0 0.0
    %1182 = vmatprep.subr.mxu0 0.0
    %1183 = vmatpush1.msra.mxu0 0.0
    %1184 = vmatprep.subr.mxu0 0.0
    %1185 = vmatpush1.msra.mxu0 0.0
    %1186 = vmatprep.subr.mxu0 0.0
    %1187 = vmatpush1.msra.mxu0 0.0
    %1188 = vmatprep.subr.mxu0 0.0
    %1189 = vmatpush1.msra.mxu0 0.0
    %1190 = vmatprep.subr.mxu0 0.0
    %1191 = vmatpush1.msra.mxu0 0.0
    %1192 = vmatprep.subr.mxu0 0.0
    %1193 = vmatpush1.msra.mxu0 0.0
    %1194 = vmatprep.subr.mxu0 0.0
    %1195 = vmatpush1.msra.mxu0 0.0
    %1196 = vmatprep.subr.mxu0 0.0
    %1197 = vmatpush1.msra.mxu0 0.0
    %1198 = vmatprep.subr.mxu0 0.0
    %1199 = vmatpush1.msra.mxu0 0.0
    %1200 = vmatprep.subr.mxu0 0.0
    %1201 = vmatpush1.msra.mxu0 0.0
    %1202 = vmatprep.subr.mxu0 0.0
    %1203 = vmatpush1.msra.mxu0 0.0
    %1204 = vmatprep.subr.mxu0 0.0
    %1205 = vmatpush1.msra.mxu0 0.0
    %1206 = vmatprep.subr.mxu0 0.0
    %1207 = vmatpush1.msra.mxu0 0.0
    %1208 = vmatprep.mubr.f32.mxu0 0.0
    %1209 = vmatmul.mubr.f32.gmra.mrb[0].mxu0 %v1142
    %v1210 = vpop.f32.mrb[0].mxu0
    %v1211 = vadd.f32 0.0, %v1210
    %v1212 = vpop.f32.mrb[0].mxu0
    %1213 = vdwg.mxu0
    %1214 = vrot.lane.b32.xlu0 %v122, 48
    %v1215 = vpop.permute.xlu0 %1214
    %v1218 = vsel %vm128, %v1137, 0
    %1220 = vmatprep.subr.mxu0 0.0
    %1221 = vmatpush1.msra.mxu0 %v1215
    %1222 = vmatprep.subr.mxu0 0.0
    %1223 = vmatpush1.msra.mxu0 0.0
    %1224 = vmatprep.subr.mxu0 0.0
    %1225 = vmatpush1.msra.mxu0 0.0
    %1226 = vmatprep.subr.mxu0 0.0
    %1227 = vmatpush1.msra.mxu0 0.0
    %1228 = vmatprep.subr.mxu0 0.0
    %1229 = vmatpush1.msra.mxu0 0.0
    %1230 = vmatprep.subr.mxu0 0.0
    %1231 = vmatpush1.msra.mxu0 0.0
    %1232 = vmatprep.subr.mxu0 0.0
    %1233 = vmatpush1.msra.mxu0 0.0
    %1234 = vmatprep.subr.mxu0 0.0
    %1235 = vmatpush1.msra.mxu0 0.0
    %1236 = vmatprep.subr.mxu0 0.0
    %1237 = vmatpush1.msra.mxu0 0.0
    %1238 = vmatprep.subr.mxu0 0.0
    %1239 = vmatpush1.msra.mxu0 0.0
    %1240 = vmatprep.subr.mxu0 0.0
    %1241 = vmatpush1.msra.mxu0 0.0
    %1242 = vmatprep.subr.mxu0 0.0
    %1243 = vmatpush1.msra.mxu0 0.0
    %1244 = vmatprep.subr.mxu0 0.0
    %1245 = vmatpush1.msra.mxu0 0.0
    %1246 = vmatprep.subr.mxu0 0.0
    %1247 = vmatpush1.msra.mxu0 0.0
    %1248 = vmatprep.subr.mxu0 0.0
    %1249 = vmatpush1.msra.mxu0 0.0
    %1250 = vmatprep.subr.mxu0 0.0
    %1251 = vmatpush1.msra.mxu0 0.0
    %1252 = vmatprep.subr.mxu0 0.0
    %1253 = vmatpush1.msra.mxu0 0.0
    %1254 = vmatprep.subr.mxu0 0.0
    %1255 = vmatpush1.msra.mxu0 0.0
    %1256 = vmatprep.subr.mxu0 0.0
    %1257 = vmatpush1.msra.mxu0 0.0
    %1258 = vmatprep.subr.mxu0 0.0
    %1259 = vmatpush1.msra.mxu0 0.0
    %1260 = vmatprep.subr.mxu0 0.0
    %1261 = vmatpush1.msra.mxu0 0.0
    %1262 = vmatprep.subr.mxu0 0.0
    %1263 = vmatpush1.msra.mxu0 0.0
    %1264 = vmatprep.subr.mxu0 0.0
    %1265 = vmatpush1.msra.mxu0 0.0
    %1266 = vmatprep.subr.mxu0 0.0
    %1267 = vmatpush1.msra.mxu0 0.0
    %1268 = vmatprep.subr.mxu0 0.0
    %1269 = vmatpush1.msra.mxu0 0.0
    %1270 = vmatprep.subr.mxu0 0.0
    %1271 = vmatpush1.msra.mxu0 0.0
    %1272 = vmatprep.subr.mxu0 0.0
    %1273 = vmatpush1.msra.mxu0 0.0
    %1274 = vmatprep.subr.mxu0 0.0
    %1275 = vmatpush1.msra.mxu0 0.0
    %1276 = vmatprep.subr.mxu0 0.0
    %1277 = vmatpush1.msra.mxu0 0.0
    %1278 = vmatprep.subr.mxu0 0.0
    %1279 = vmatpush1.msra.mxu0 0.0
    %1280 = vmatprep.subr.mxu0 0.0
    %1281 = vmatpush1.msra.mxu0 0.0
    %1282 = vmatprep.subr.mxu0 0.0
    %1283 = vmatpush1.msra.mxu0 0.0
    %1284 = vmatprep.mubr.f32.mxu0 0.0
    %1285 = vmatmul.mubr.f32.gmra.mrb[0].mxu0 %v1218
    %v1286 = vpop.f32.mrb[0].mxu0
    %v1287 = vadd.f32 0.0, %v1286
    %v1288 = vpop.f32.mrb[0].mxu0
    %1289 = vdwg.mxu0
    %1291 = vrot.lane.b32.xlu0 %v31, 32
    %v1292 = vpop.permute.xlu0 %1291
    %v1295 = vsel %vm128, %v1211, 0
    %v1298 = vsel %vm128, %v1287, 0
    %1300 = vmatprep.subr.mxu0 0.0
    %1301 = vmatpush1.msra.mxu0 %v1292
    %1302 = vmatprep.subr.mxu0 0.0
    %1303 = vmatpush1.msra.mxu0 0.0
    %1304 = vmatprep.subr.mxu0 0.0
    %1305 = vmatpush1.msra.mxu0 0.0
    %1306 = vmatprep.subr.mxu0 0.0
    %1307 = vmatpush1.msra.mxu0 0.0
    %1308 = vmatprep.subr.mxu0 0.0
    %1309 = vmatpush1.msra.mxu0 0.0
    %1310 = vmatprep.subr.mxu0 0.0
    %1311 = vmatpush1.msra.mxu0 0.0
    %1312 = vmatprep.subr.mxu0 0.0
    %1313 = vmatpush1.msra.mxu0 0.0
    %1314 = vmatprep.subr.mxu0 0.0
    %1315 = vmatpush1.msra.mxu0 0.0
    %1316 = vmatprep.subr.mxu0 0.0
    %1317 = vmatpush1.msra.mxu0 0.0
    %1318 = vmatprep.subr.mxu0 0.0
    %1319 = vmatpush1.msra.mxu0 0.0
    %1320 = vmatprep.subr.mxu0 0.0
    %1321 = vmatpush1.msra.mxu0 0.0
    %1322 = vmatprep.subr.mxu0 0.0
    %1323 = vmatpush1.msra.mxu0 0.0
    %1324 = vmatprep.subr.mxu0 0.0
    %1325 = vmatpush1.msra.mxu0 0.0
    %1326 = vmatprep.subr.mxu0 0.0
    %1327 = vmatpush1.msra.mxu0 0.0
    %1328 = vmatprep.subr.mxu0 0.0
    %1329 = vmatpush1.msra.mxu0 0.0
    %1330 = vmatprep.subr.mxu0 0.0
    %1331 = vmatpush1.msra.mxu0 0.0
    %1332 = vmatprep.subr.mxu0 0.0
    %1333 = vmatpush1.msra.mxu0 0.0
    %1334 = vmatprep.subr.mxu0 0.0
    %1335 = vmatpush1.msra.mxu0 0.0
    %1336 = vmatprep.subr.mxu0 0.0
    %1337 = vmatpush1.msra.mxu0 0.0
    %1338 = vmatprep.subr.mxu0 0.0
    %1339 = vmatpush1.msra.mxu0 0.0
    %1340 = vmatprep.subr.mxu0 0.0
    %1341 = vmatpush1.msra.mxu0 0.0
    %1342 = vmatprep.subr.mxu0 0.0
    %1343 = vmatpush1.msra.mxu0 0.0
    %1344 = vmatprep.subr.mxu0 0.0
    %1345 = vmatpush1.msra.mxu0 0.0
    %1346 = vmatprep.subr.mxu0 0.0
    %1347 = vmatpush1.msra.mxu0 0.0
    %1348 = vmatprep.subr.mxu0 0.0
    %1349 = vmatpush1.msra.mxu0 0.0
    %1350 = vmatprep.subr.mxu0 0.0
    %1351 = vmatpush1.msra.mxu0 0.0
    %1352 = vmatprep.subr.mxu0 0.0
    %1353 = vmatpush1.msra.mxu0 0.0
    %1354 = vmatprep.subr.mxu0 0.0
    %1355 = vmatpush1.msra.mxu0 0.0
    %1356 = vmatprep.subr.mxu0 0.0
    %1357 = vmatpush1.msra.mxu0 0.0
    %1358 = vmatprep.subr.mxu0 0.0
    %1359 = vmatpush1.msra.mxu0 0.0
    %1360 = vmatprep.subr.mxu0 0.0
    %1361 = vmatpush1.msra.mxu0 0.0
    %1362 = vmatprep.subr.mxu0 0.0
    %1363 = vmatpush1.msra.mxu0 0.0
    %1364 = vmatprep.mubr.f32.mxu0 0.0
    %1365 = vmatmul.mubr.f32.gmra.mrb[0].mxu0 %v1295
    %v1366 = vpop.f32.mrb[0].mxu0
    %v1367 = vadd.f32 0.0, %v1366
    %v1368 = vpop.f32.mrb[0].mxu0
    %1369 = vmatprep.mubr.f32.mxu0 0.0
    %1370 = vmatmul.mubr.f32.gmra.mrb[0].mxu0 %v1298
    %v1371 = vpop.f32.mrb[0].mxu0
    %v1372 = vadd.f32 0.0, %v1371
    %v1373 = vpop.f32.mrb[0].mxu0
    %1374 = vdwg.mxu0
    %v1375 = vadd.f32 %v950, %v1367
    %v1376 = vadd.f32 %v955, %v1372
    %1377 = vrot.lane.b32.xlu0 %v117, 104
    %v1378 = vpop.permute.xlu0 %1377
    %1379 = vrot.lane.b32.xlu0 %v117, 72
    %v1380 = vpop.permute.xlu0 %1379
    %v1381 = vsel %vm128, %v1378, 0
    %v1383 = vsel %vm128, %v1380, 0
    %1385 = vmatprep.subr.mxu0 0.0
    %1386 = vmatpush1.xpose.msra.mxu0 %v1383
    %1387 = vmatprep.subr.mxu0 0.0
    %1388 = vmatpush1.xpose.msra.mxu0 0.0
    %1389 = vmatprep.subr.mxu0 0.0
    %1390 = vmatpush1.xpose.msra.mxu0 0.0
    %1391 = vmatprep.subr.mxu0 0.0
    %1392 = vmatpush1.xpose.msra.mxu0 0.0
    %1393 = vmatprep.subr.mxu0 0.0
    %1394 = vmatpush1.xpose.msra.mxu0 0.0
    %1395 = vmatprep.subr.mxu0 0.0
    %1396 = vmatpush1.xpose.msra.mxu0 0.0
    %1397 = vmatprep.subr.mxu0 0.0
    %1398 = vmatpush1.xpose.msra.mxu0 0.0
    %1399 = vmatprep.subr.mxu0 0.0
    %1400 = vmatpush1.xpose.msra.mxu0 0.0
    %1401 = vmatprep.subr.mxu0 0.0
    %1402 = vmatpush1.xpose.msra.mxu0 0.0
    %1403 = vmatprep.subr.mxu0 0.0
    %1404 = vmatpush1.xpose.msra.mxu0 0.0
    %1405 = vmatprep.subr.mxu0 0.0
    %1406 = vmatpush1.xpose.msra.mxu0 0.0
    %1407 = vmatprep.subr.mxu0 0.0
    %1408 = vmatpush1.xpose.msra.mxu0 0.0
    %1409 = vmatprep.subr.mxu0 0.0
    %1410 = vmatpush1.xpose.msra.mxu0 0.0
    %1411 = vmatprep.subr.mxu0 0.0
    %1412 = vmatpush1.xpose.msra.mxu0 0.0
    %1413 = vmatprep.subr.mxu0 0.0
    %1414 = vmatpush1.xpose.msra.mxu0 0.0
    %1415 = vmatprep.subr.mxu0 0.0
    %1416 = vmatpush1.xpose.msra.mxu0 0.0
    %1417 = vmatprep.subr.mxu0 0.0
    %1418 = vmatpush1.xpose.msra.mxu0 0.0
    %1419 = vmatprep.subr.mxu0 0.0
    %1420 = vmatpush1.xpose.msra.mxu0 0.0
    %1421 = vmatprep.subr.mxu0 0.0
    %1422 = vmatpush1.xpose.msra.mxu0 0.0
    %1423 = vmatprep.subr.mxu0 0.0
    %1424 = vmatpush1.xpose.msra.mxu0 0.0
    %1425 = vmatprep.subr.mxu0 0.0
    %1426 = vmatpush1.xpose.msra.mxu0 0.0
    %1427 = vmatprep.subr.mxu0 0.0
    %1428 = vmatpush1.xpose.msra.mxu0 0.0
    %1429 = vmatprep.subr.mxu0 0.0
    %1430 = vmatpush1.xpose.msra.mxu0 0.0
    %1431 = vmatprep.subr.mxu0 0.0
    %1432 = vmatpush1.xpose.msra.mxu0 0.0
    %1433 = vmatprep.subr.mxu0 0.0
    %1434 = vmatpush1.xpose.msra.mxu0 0.0
    %1435 = vmatprep.subr.mxu0 0.0
    %1436 = vmatpush1.xpose.msra.mxu0 0.0
    %1437 = vmatprep.subr.mxu0 0.0
    %1438 = vmatpush1.xpose.msra.mxu0 0.0
    %1439 = vmatprep.subr.mxu0 0.0
    %1440 = vmatpush1.xpose.msra.mxu0 0.0
    %1441 = vmatprep.subr.mxu0 0.0
    %1442 = vmatpush1.xpose.msra.mxu0 0.0
    %1443 = vmatprep.subr.mxu0 0.0
    %1444 = vmatpush1.xpose.msra.mxu0 0.0
    %1445 = vmatprep.subr.mxu0 0.0
    %1446 = vmatpush1.xpose.msra.mxu0 0.0
    %1447 = vmatprep.subr.mxu0 0.0
    %1448 = vmatpush1.xpose.msra.mxu0 0.0
    %1449 = vmatprep.mubr.f32.mxu0 0.0
    %1450 = vmatmul.mubr.f32.gmra.mrb[0].mxu0 %v1381
    %v1451 = vpop.f32.mrb[0].mxu0
    %v1452 = vadd.f32 0.0, %v1451
    %v1453 = vpop.f32.mrb[0].mxu0
    %1454 = vdwg.mxu0
    %1455 = vrot.lane.b32.xlu0 %v122, 104
    %v1456 = vpop.permute.xlu0 %1455
    %1457 = vrot.lane.b32.xlu0 %v122, 72
    %v1458 = vpop.permute.xlu0 %1457
    %v1459 = vsel %vm128, %v1456, 0
    %v1461 = vsel %vm128, %v1458, 0
    %1463 = vmatprep.subr.mxu0 0.0
    %1464 = vmatpush1.xpose.msra.mxu0 %v1461
    %1465 = vmatprep.subr.mxu0 0.0
    %1466 = vmatpush1.xpose.msra.mxu0 0.0
    %1467 = vmatprep.subr.mxu0 0.0
    %1468 = vmatpush1.xpose.msra.mxu0 0.0
    %1469 = vmatprep.subr.mxu0 0.0
    %1470 = vmatpush1.xpose.msra.mxu0 0.0
    %1471 = vmatprep.subr.mxu0 0.0
    %1472 = vmatpush1.xpose.msra.mxu0 0.0
    %1473 = vmatprep.subr.mxu0 0.0
    %1474 = vmatpush1.xpose.msra.mxu0 0.0
    %1475 = vmatprep.subr.mxu0 0.0
    %1476 = vmatpush1.xpose.msra.mxu0 0.0
    %1477 = vmatprep.subr.mxu0 0.0
    %1478 = vmatpush1.xpose.msra.mxu0 0.0
    %1479 = vmatprep.subr.mxu0 0.0
    %1480 = vmatpush1.xpose.msra.mxu0 0.0
    %1481 = vmatprep.subr.mxu0 0.0
    %1482 = vmatpush1.xpose.msra.mxu0 0.0
    %1483 = vmatprep.subr.mxu0 0.0
    %1484 = vmatpush1.xpose.msra.mxu0 0.0
    %1485 = vmatprep.subr.mxu0 0.0
    %1486 = vmatpush1.xpose.msra.mxu0 0.0
    %1487 = vmatprep.subr.mxu0 0.0
    %1488 = vmatpush1.xpose.msra.mxu0 0.0
    %1489 = vmatprep.subr.mxu0 0.0
    %1490 = vmatpush1.xpose.msra.mxu0 0.0
    %1491 = vmatprep.subr.mxu0 0.0
    %1492 = vmatpush1.xpose.msra.mxu0 0.0
    %1493 = vmatprep.subr.mxu0 0.0
    %1494 = vmatpush1.xpose.msra.mxu0 0.0
    %1495 = vmatprep.subr.mxu0 0.0
    %1496 = vmatpush1.xpose.msra.mxu0 0.0
    %1497 = vmatprep.subr.mxu0 0.0
    %1498 = vmatpush1.xpose.msra.mxu0 0.0
    %1499 = vmatprep.subr.mxu0 0.0
    %1500 = vmatpush1.xpose.msra.mxu0 0.0
    %1501 = vmatprep.subr.mxu0 0.0
    %1502 = vmatpush1.xpose.msra.mxu0 0.0
    %1503 = vmatprep.subr.mxu0 0.0
    %1504 = vmatpush1.xpose.msra.mxu0 0.0
    %1505 = vmatprep.subr.mxu0 0.0
    %1506 = vmatpush1.xpose.msra.mxu0 0.0
    %1507 = vmatprep.subr.mxu0 0.0
    %1508 = vmatpush1.xpose.msra.mxu0 0.0
    %1509 = vmatprep.subr.mxu0 0.0
    %1510 = vmatpush1.xpose.msra.mxu0 0.0
    %1511 = vmatprep.subr.mxu0 0.0
    %1512 = vmatpush1.xpose.msra.mxu0 0.0
    %1513 = vmatprep.subr.mxu0 0.0
    %1514 = vmatpush1.xpose.msra.mxu0 0.0
    %1515 = vmatprep.subr.mxu0 0.0
    %1516 = vmatpush1.xpose.msra.mxu0 0.0
    %1517 = vmatprep.subr.mxu0 0.0
    %1518 = vmatpush1.xpose.msra.mxu0 0.0
    %1519 = vmatprep.subr.mxu0 0.0
    %1520 = vmatpush1.xpose.msra.mxu0 0.0
    %1521 = vmatprep.subr.mxu0 0.0
    %1522 = vmatpush1.xpose.msra.mxu0 0.0
    %1523 = vmatprep.subr.mxu0 0.0
    %1524 = vmatpush1.xpose.msra.mxu0 0.0
    %1525 = vmatprep.subr.mxu0 0.0
    %1526 = vmatpush1.xpose.msra.mxu0 0.0
    %1527 = vmatprep.mubr.f32.mxu0 0.0
    %1528 = vmatmul.mubr.f32.gmra.mrb[0].mxu0 %v1459
    %v1529 = vpop.f32.mrb[0].mxu0
    %v1530 = vadd.f32 0.0, %v1529
    %v1531 = vpop.f32.mrb[0].mxu0
    %1532 = vdwg.mxu0
    %v1533 = vmul.f32 %v1452, 0.35355338
    %v1534 = vmul.f32 %v1530, 0.35355338
    %v1535 = vsel %vm128, %v1533, -inf
    %1536 = vmax.xlane.f32.xlu0 %v1535
    %v1537 = vpop.xlane.xlu0 %1536
    %v1538 = vsel %vm128, %v1534, -inf
    %1539 = vmax.xlane.f32.xlu0 %v1538
    %v1540 = vpop.xlane.xlu0 %1539
    %v1541 = vsub.f32 %v1533, %v1537
    %v1542 = vsub.f32 %v1534, %v1540
    %v1543 = vmul.f32 %v1541, 1.442695
    %v1544 = vpow.pop %v1543
    %v1545 = vmul.f32 %v1542, 1.442695
    %v1546 = vpow.pop %v1545
    %v1547 = vsel %vm128, %v1544, 0.0
    %1548 = vadd.xlane.f32.xlu0 %v1547
    %v1549 = vpop.xlane.xlu0 %1548
    %v1550 = vsel %vm128, %v1546, 0.0
    %1551 = vadd.xlane.f32.xlu0 %v1550
    %v1552 = vpop.xlane.xlu0 %1551
    %v1553 = vrcp.pop %v1549
    %v1554 = vrcp.pop %v1552
    %v1555 = vmul.f32 %v1544, %v1553
    %v1556 = vmul.f32 %v1546, %v1554
    %1557 = vrot.lane.b32.xlu0 %v117, 40
    %v1558 = vpop.permute.xlu0 %1557
    %v1561 = vsel %vm128, %v1555, 0
    %1563 = vmatprep.subr.mxu0 0.0
    %1564 = vmatpush1.msra.mxu0 %v1558
    %1565 = vmatprep.subr.mxu0 0.0
    %1566 = vmatpush1.msra.mxu0 0.0
    %1567 = vmatprep.subr.mxu0 0.0
    %1568 = vmatpush1.msra.mxu0 0.0
    %1569 = vmatprep.subr.mxu0 0.0
    %1570 = vmatpush1.msra.mxu0 0.0
    %1571 = vmatprep.subr.mxu0 0.0
    %1572 = vmatpush1.msra.mxu0 0.0
    %1573 = vmatprep.subr.mxu0 0.0
    %1574 = vmatpush1.msra.mxu0 0.0
    %1575 = vmatprep.subr.mxu0 0.0
    %1576 = vmatpush1.msra.mxu0 0.0
    %1577 = vmatprep.subr.mxu0 0.0
    %1578 = vmatpush1.msra.mxu0 0.0
    %1579 = vmatprep.subr.mxu0 0.0
    %1580 = vmatpush1.msra.mxu0 0.0
    %1581 = vmatprep.subr.mxu0 0.0
    %1582 = vmatpush1.msra.mxu0 0.0
    %1583 = vmatprep.subr.mxu0 0.0
    %1584 = vmatpush1.msra.mxu0 0.0
    %1585 = vmatprep.subr.mxu0 0.0
    %1586 = vmatpush1.msra.mxu0 0.0
    %1587 = vmatprep.subr.mxu0 0.0
    %1588 = vmatpush1.msra.mxu0 0.0
    %1589 = vmatprep.subr.mxu0 0.0
    %1590 = vmatpush1.msra.mxu0 0.0
    %1591 = vmatprep.subr.mxu0 0.0
    %1592 = vmatpush1.msra.mxu0 0.0
    %1593 = vmatprep.subr.mxu0 0.0
    %1594 = vmatpush1.msra.mxu0 0.0
    %1595 = vmatprep.subr.mxu0 0.0
    %1596 = vmatpush1.msra.mxu0 0.0
    %1597 = vmatprep.subr.mxu0 0.0
    %1598 = vmatpush1.msra.mxu0 0.0
    %1599 = vmatprep.subr.mxu0 0.0
    %1600 = vmatpush1.msra.mxu0 0.0
    %1601 = vmatprep.subr.mxu0 0.0
    %1602 = vmatpush1.msra.mxu0 0.0
    %1603 = vmatprep.subr.mxu0 0.0
    %1604 = vmatpush1.msra.mxu0 0.0
    %1605 = vmatprep.subr.mxu0 0.0
    %1606 = vmatpush1.msra.mxu0 0.0
    %1607 = vmatprep.subr.mxu0 0.0
    %1608 = vmatpush1.msra.mxu0 0.0
    %1609 = vmatprep.subr.mxu0 0.0
    %1610 = vmatpush1.msra.mxu0 0.0
    %1611 = vmatprep.subr.mxu0 0.0
    %1612 = vmatpush1.msra.mxu0 0.0
    %1613 = vmatprep.subr.mxu0 0.0
    %1614 = vmatpush1.msra.mxu0 0.0
    %1615 = vmatprep.subr.mxu0 0.0
    %1616 = vmatpush1.msra.mxu0 0.0
    %1617 = vmatprep.subr.mxu0 0.0
    %1618 = vmatpush1.msra.mxu0 0.0
    %1619 = vmatprep.subr.mxu0 0.0
    %1620 = vmatpush1.msra.mxu0 0.0
    %1621 = vmatprep.subr.mxu0 0.0
    %1622 = vmatpush1.msra.mxu0 0.0
    %1623 = vmatprep.subr.mxu0 0.0
    %1624 = vmatpush1.msra.mxu0 0.0
    %1625 = vmatprep.subr.mxu0 0.0
    %1626 = vmatpush1.msra.mxu0 0.0
    %1627 = vmatprep.mubr.f32.mxu0 0.0
    %1628 = vmatmul.mubr.f32.gmra.mrb[0].mxu0 %v1561
    %v1629 = vpop.f32.mrb[0].mxu0
    %v1630 = vadd.f32 0.0, %v1629
    %v1631 = vpop.f32.mrb[0].mxu0
    %1632 = vdwg.mxu0
    %1633 = vrot.lane.b32.xlu0 %v122, 40
    %v1634 = vpop.permute.xlu0 %1633
    %v1637 = vsel %vm128, %v1556, 0
    %1639 = vmatprep.subr.mxu0 0.0
    %1640 = vmatpush1.msra.mxu0 %v1634
    %1641 = vmatprep.subr.mxu0 0.0
    %1642 = vmatpush1.msra.mxu0 0.0
    %1643 = vmatprep.subr.mxu0 0.0
    %1644 = vmatpush1.msra.mxu0 0.0
    %1645 = vmatprep.subr.mxu0 0.0
    %1646 = vmatpush1.msra.mxu0 0.0
    %1647 = vmatprep.subr.mxu0 0.0
    %1648 = vmatpush1.msra.mxu0 0.0
    %1649 = vmatprep.subr.mxu0 0.0
    %1650 = vmatpush1.msra.mxu0 0.0
    %1651 = vmatprep.subr.mxu0 0.0
    %1652 = vmatpush1.msra.mxu0 0.0
    %1653 = vmatprep.subr.mxu0 0.0
    %1654 = vmatpush1.msra.mxu0 0.0
    %1655 = vmatprep.subr.mxu0 0.0
    %1656 = vmatpush1.msra.mxu0 0.0
    %1657 = vmatprep.subr.mxu0 0.0
    %1658 = vmatpush1.msra.mxu0 0.0
    %1659 = vmatprep.subr.mxu0 0.0
    %1660 = vmatpush1.msra.mxu0 0.0
    %1661 = vmatprep.subr.mxu0 0.0
    %1662 = vmatpush1.msra.mxu0 0.0
    %1663 = vmatprep.subr.mxu0 0.0
    %1664 = vmatpush1.msra.mxu0 0.0
    %1665 = vmatprep.subr.mxu0 0.0
    %1666 = vmatpush1.msra.mxu0 0.0
    %1667 = vmatprep.subr.mxu0 0.0
    %1668 = vmatpush1.msra.mxu0 0.0
    %1669 = vmatprep.subr.mxu0 0.0
    %1670 = vmatpush1.msra.mxu0 0.0
    %1671 = vmatprep.subr.mxu0 0.0
    %1672 = vmatpush1.msra.mxu0 0.0
    %1673 = vmatprep.subr.mxu0 0.0
    %1674 = vmatpush1.msra.mxu0 0.0
    %1675 = vmatprep.subr.mxu0 0.0
    %1676 = vmatpush1.msra.mxu0 0.0
    %1677 = vmatprep.subr.mxu0 0.0
    %1678 = vmatpush1.msra.mxu0 0.0
    %1679 = vmatprep.subr.mxu0 0.0
    %1680 = vmatpush1.msra.mxu0 0.0
    %1681 = vmatprep.subr.mxu0 0.0
    %1682 = vmatpush1.msra.mxu0 0.0
    %1683 = vmatprep.subr.mxu0 0.0
    %1684 = vmatpush1.msra.mxu0 0.0
    %1685 = vmatprep.subr.mxu0 0.0
    %1686 = vmatpush1.msra.mxu0 0.0
    %1687 = vmatprep.subr.mxu0 0.0
    %1688 = vmatpush1.msra.mxu0 0.0
    %1689 = vmatprep.subr.mxu0 0.0
    %1690 = vmatpush1.msra.mxu0 0.0
    %1691 = vmatprep.subr.mxu0 0.0
    %1692 = vmatpush1.msra.mxu0 0.0
    %1693 = vmatprep.subr.mxu0 0.0
    %1694 = vmatpush1.msra.mxu0 0.0
    %1695 = vmatprep.subr.mxu0 0.0
    %1696 = vmatpush1.msra.mxu0 0.0
    %1697 = vmatprep.subr.mxu0 0.0
    %1698 = vmatpush1.msra.mxu0 0.0
    %1699 = vmatprep.subr.mxu0 0.0
    %1700 = vmatpush1.msra.mxu0 0.0
    %1701 = vmatprep.subr.mxu0 0.0
    %1702 = vmatpush1.msra.mxu0 0.0
    %1703 = vmatprep.mubr.f32.mxu0 0.0
    %1704 = vmatmul.mubr.f32.gmra.mrb[0].mxu0 %v1637
    %v1705 = vpop.f32.mrb[0].mxu0
    %v1706 = vadd.f32 0.0, %v1705
    %v1707 = vpop.f32.mrb[0].mxu0
    %1708 = vdwg.mxu0
    %1710 = vrot.lane.b32.xlu0 %v32, 32
    %v1711 = vpop.permute.xlu0 %1710
    %v1714 = vsel %vm128, %v1630, 0
    %v1717 = vsel %vm128, %v1706, 0
    %1719 = vmatprep.subr.mxu0 0.0
    %1720 = vmatpush1.msra.mxu0 %v1711
    %1721 = vmatprep.subr.mxu0 0.0
    %1722 = vmatpush1.msra.mxu0 0.0
    %1723 = vmatprep.subr.mxu0 0.0
    %1724 = vmatpush1.msra.mxu0 0.0
    %1725 = vmatprep.subr.mxu0 0.0
    %1726 = vmatpush1.msra.mxu0 0.0
    %1727 = vmatprep.subr.mxu0 0.0
    %1728 = vmatpush1.msra.mxu0 0.0
    %1729 = vmatprep.subr.mxu0 0.0
    %1730 = vmatpush1.msra.mxu0 0.0
    %1731 = vmatprep.subr.mxu0 0.0
    %1732 = vmatpush1.msra.mxu0 0.0
    %1733 = vmatprep.subr.mxu0 0.0
    %1734 = vmatpush1.msra.mxu0 0.0
    %1735 = vmatprep.subr.mxu0 0.0
    %1736 = vmatpush1.msra.mxu0 0.0
    %1737 = vmatprep.subr.mxu0 0.0
    %1738 = vmatpush1.msra.mxu0 0.0
    %1739 = vmatprep.subr.mxu0 0.0
    %1740 = vmatpush1.msra.mxu0 0.0
    %1741 = vmatprep.subr.mxu0 0.0
    %1742 = vmatpush1.msra.mxu0 0.0
    %1743 = vmatprep.subr.mxu0 0.0
    %1744 = vmatpush1.msra.mxu0 0.0
    %1745 = vmatprep.subr.mxu0 0.0
    %1746 = vmatpush1.msra.mxu0 0.0
    %1747 = vmatprep.subr.mxu0 0.0
    %1748 = vmatpush1.msra.mxu0 0.0
    %1749 = vmatprep.subr.mxu0 0.0
    %1750 = vmatpush1.msra.mxu0 0.0
    %1751 = vmatprep.subr.mxu0 0.0
    %1752 = vmatpush1.msra.mxu0 0.0
    %1753 = vmatprep.subr.mxu0 0.0
    %1754 = vmatpush1.msra.mxu0 0.0
    %1755 = vmatprep.subr.mxu0 0.0
    %1756 = vmatpush1.msra.mxu0 0.0
    %1757 = vmatprep.subr.mxu0 0.0
    %1758 = vmatpush1.msra.mxu0 0.0
    %1759 = vmatprep.subr.mxu0 0.0
    %1760 = vmatpush1.msra.mxu0 0.0
    %1761 = vmatprep.subr.mxu0 0.0
    %1762 = vmatpush1.msra.mxu0 0.0
    %1763 = vmatprep.subr.mxu0 0.0
    %1764 = vmatpush1.msra.mxu0 0.0
    %1765 = vmatprep.subr.mxu0 0.0
    %1766 = vmatpush1.msra.mxu0 0.0
    %1767 = vmatprep.subr.mxu0 0.0
    %1768 = vmatpush1.msra.mxu0 0.0
    %1769 = vmatprep.subr.mxu0 0.0
    %1770 = vmatpush1.msra.mxu0 0.0
    %1771 = vmatprep.subr.mxu0 0.0
    %1772 = vmatpush1.msra.mxu0 0.0
    %1773 = vmatprep.subr.mxu0 0.0
    %1774 = vmatpush1.msra.mxu0 0.0
    %1775 = vmatprep.subr.mxu0 0.0
    %1776 = vmatpush1.msra.mxu0 0.0
    %1777 = vmatprep.subr.mxu0 0.0
    %1778 = vmatpush1.msra.mxu0 0.0
    %1779 = vmatprep.subr.mxu0 0.0
    %1780 = vmatpush1.msra.mxu0 0.0
    %1781 = vmatprep.subr.mxu0 0.0
    %1782 = vmatpush1.msra.mxu0 0.0
    %1783 = vmatprep.mubr.f32.mxu0 0.0
    %1784 = vmatmul.mubr.f32.gmra.mrb[0].mxu0 %v1714
    %v1785 = vpop.f32.mrb[0].mxu0
    %v1786 = vadd.f32 0.0, %v1785
    %v1787 = vpop.f32.mrb[0].mxu0
    %1788 = vmatprep.mubr.f32.mxu0 0.0
    %1789 = vmatmul.mubr.f32.gmra.mrb[0].mxu0 %v1717
    %v1790 = vpop.f32.mrb[0].mxu0
    %v1791 = vadd.f32 0.0, %v1790
    %v1792 = vpop.f32.mrb[0].mxu0
    %1793 = vdwg.mxu0
    %v1794 = vadd.f32 %v1375, %v1786
    %v1795 = vadd.f32 %v1376, %v1791
    %1797 = vrot.lane.b32.xlu0 %v42, 32
    %v1798 = vpop.permute.xlu0 %1797
    %v1800 = vadd.f32 %v1794, %v1798
    %v1801 = vadd.f32 %v1795, %v1798
    %v1802 = vadd.f32 %v37, %v1800
    %v1803 = vadd.f32 %v38, %v1801
    %v1804 = vsel %vm43, %v1802, 0.0
    %1805 = vadd.xlane.f32.xlu0 %v1804
    %v1806 = vpop.xlane.xlu0 %1805
    %v1807 = vsel %vm43, %v1803, 0.0
    %1808 = vadd.xlane.f32.xlu0 %v1807
    %v1809 = vpop.xlane.xlu0 %1808
    %v1810 = vrcp.pop 32.0
    %v1811 = vmul.f32 %v1806, %v1810
    %v1812 = vmul.f32 %v1809, %v1810
    %v1813 = vsub.f32 %v1802, %v1811
    %v1814 = vsub.f32 %v1803, %v1812
    %v1815 = vmul.f32 %v1813, %v1813
    %v1816 = vmul.f32 %v1814, %v1814
    %v1817 = vsel %vm43, %v1815, 0.0
    %1818 = vadd.xlane.f32.xlu0 %v1817
    %v1819 = vpop.xlane.xlu0 %1818
    %v1820 = vsel %vm43, %v1816, 0.0
    %1821 = vadd.xlane.f32.xlu0 %v1820
    %v1822 = vpop.xlane.xlu0 %1821
    %v1823 = vmul.f32 %v1819, %v1810
    %v1824 = vmul.f32 %v1822, %v1810
    %v1825 = vadd.f32 %v1823, 1e-05
    %v1826 = vadd.f32 %v1824, 1e-05
    %v1827 = vrsqrt.pop %v1825
    %v1828 = vrsqrt.pop %v1826
    %v1829 = vmul.f32 %v1813, %v1827
    %v1830 = vmul.f32 %v1814, %v1828
    %v1831 = vlaneseq
    %v1832 = vshrl.u32 %v1831, 7
    %v1833 = vsub.s32 1, %v1832
    %v1834 = vrot.slane %v27, %v1833
    %v1835 = vmul.f32 %v1829, %v1834
    %v1836 = vmul.f32 %v1830, %v1834
    %v1837 = vlaneseq
    %v1838 = vshrl.u32 %v1837, 7
    %v1839 = vsub.s32 2, %v1838
    %v1840 = vrot.slane %v27, %v1839
    %v1841 = vadd.f32 %v1835, %v1840
    %v1842 = vadd.f32 %v1836, %v1840
    %v1843 = vld [vmem:[%s4] sm:$0xff]
    %v1844 = vld [vmem:[%s4 + $0x8] sm:$0xff]
    %v1845 = vld [vmem:[%s4 + $0x10] sm:$0xff]
    %v1846 = vld [vmem:[%s4 + $0x18] sm:$0xff]
    %v1847 = vlaneseq
    %v1848 = vshrl.u32 %v1847, 7
    %v1849 = vsub.s32 1, %v1848
    %v1850 = vrot.slane %v28, %v1849
    %v1852 = vsel %vm43, %v1841, 0
    %v1855 = vsel %vm43, %v1842, 0
    %1857 = vmatprep.subr.mxu0 0.0
    %1858 = vmatpush1.msra.mxu0 %v1843
    %1859 = vmatprep.subr.mxu0 0.0
    %1860 = vmatpush1.msra.mxu0 %v1844
    %1861 = vmatprep.subr.mxu0 0.0
    %1862 = vmatpush1.msra.mxu0 %v1845
    %1863 = vmatprep.subr.mxu0 0.0
    %1864 = vmatpush1.msra.mxu0 %v1846
    %1865 = vmatprep.subr.mxu0 0.0
    %1866 = vmatpush1.msra.mxu0 0.0
    %1867 = vmatprep.subr.mxu0 0.0
    %1868 = vmatpush1.msra.mxu0 0.0
    %1869 = vmatprep.subr.mxu0 0.0
    %1870 = vmatpush1.msra.mxu0 0.0
    %1871 = vmatprep.subr.mxu0 0.0
    %1872 = vmatpush1.msra.mxu0 0.0
    %1873 = vmatprep.subr.mxu0 0.0
    %1874 = vmatpush1.msra.mxu0 0.0
    %1875 = vmatprep.subr.mxu0 0.0
    %1876 = vmatpush1.msra.mxu0 0.0
    %1877 = vmatprep.subr.mxu0 0.0
    %1878 = vmatpush1.msra.mxu0 0.0
    %1879 = vmatprep.subr.mxu0 0.0
    %1880 = vmatpush1.msra.mxu0 0.0
    %1881 = vmatprep.subr.mxu0 0.0
    %1882 = vmatpush1.msra.mxu0 0.0
    %1883 = vmatprep.subr.mxu0 0.0
    %1884 = vmatpush1.msra.mxu0 0.0
    %1885 = vmatprep.subr.mxu0 0.0
    %1886 = vmatpush1.msra.mxu0 0.0
    %1887 = vmatprep.subr.mxu0 0.0
    %1888 = vmatpush1.msra.mxu0 0.0
    %1889 = vmatprep.subr.mxu0 0.0
    %1890 = vmatpush1.msra.mxu0 0.0
    %1891 = vmatprep.subr.mxu0 0.0
    %1892 = vmatpush1.msra.mxu0 0.0
    %1893 = vmatprep.subr.mxu0 0.0
    %1894 = vmatpush1.msra.mxu0 0.0
    %1895 = vmatprep.subr.mxu0 0.0
    %1896 = vmatpush1.msra.mxu0 0.0
    %1897 = vmatprep.subr.mxu0 0.0
    %1898 = vmatpush1.msra.mxu0 0.0
    %1899 = vmatprep.subr.mxu0 0.0
    %1900 = vmatpush1.msra.mxu0 0.0
    %1901 = vmatprep.subr.mxu0 0.0
    %1902 = vmatpush1.msra.mxu0 0.0
    %1903 = vmatprep.subr.mxu0 0.0
    %1904 = vmatpush1.msra.mxu0 0.0
    %1905 = vmatprep.subr.mxu0 0.0
    %1906 = vmatpush1.msra.mxu0 0.0
    %1907 = vmatprep.subr.mxu0 0.0
    %1908 = vmatpush1.msra.mxu0 0.0
    %1909 = vmatprep.subr.mxu0 0.0
    %1910 = vmatpush1.msra.mxu0 0.0
    %1911 = vmatprep.subr.mxu0 0.0
    %1912 = vmatpush1.msra.mxu0 0.0
    %1913 = vmatprep.subr.mxu0 0.0
    %1914 = vmatpush1.msra.mxu0 0.0
    %1915 = vmatprep.subr.mxu0 0.0
    %1916 = vmatpush1.msra.mxu0 0.0
    %1917 = vmatprep.subr.mxu0 0.0
    %1918 = vmatpush1.msra.mxu0 0.0
    %1919 = vmatprep.subr.mxu0 0.0
    %1920 = vmatpush1.msra.mxu0 0.0
    %1921 = vmatprep.mubr.f32.mxu0 0.0
    %1922 = vmatmul.mubr.f32.gmra.mrb[0].mxu0 %v1852
    %v1923 = vpop.f32.mrb[0].mxu0
    %v1924 = vadd.f32 %v1850, %v1923
    %v1925 = vpop.f32.mrb[0].mxu0
    %1926 = vmatprep.mubr.f32.mxu0 0.0
    %1927 = vmatmul.mubr.f32.gmra.mrb[0].mxu0 %v1855
    %v1928 = vpop.f32.mrb[0].mxu0
    %v1929 = vadd.f32 %v1850, %v1928
    %v1930 = vpop.f32.mrb[0].mxu0
    %1931 = vdwg.mxu0
    %v1932 = vmax.f32 %v1924, 0.0
    %v1933 = vmax.f32 %v1929, 0.0
    %v1934 = vld [vmem:[%s5] sm:$0xff]
    %v1935 = vld [vmem:[%s5 + $0x8] sm:$0xff]
    %v1936 = vld [vmem:[%s5 + $0x10] sm:$0xff]
    %v1937 = vld [vmem:[%s5 + $0x18] sm:$0xff]
    %v1938 = vld [vmem:[%s5 + $0x20] sm:$0xff]
    %v1939 = vld [vmem:[%s5 + $0x28] sm:$0xff]
    %v1940 = vld [vmem:[%s5 + $0x30] sm:$0xff]
    %v1941 = vld [vmem:[%s5 + $0x38] sm:$0xff]
    %v1942 = vld [vmem:[%s5 + $0x40] sm:$0xff]
    %v1943 = vld [vmem:[%s5 + $0x48] sm:$0xff]
    %v1944 = vld [vmem:[%s5 + $0x50] sm:$0xff]
    %v1945 = vld [vmem:[%s5 + $0x58] sm:$0xff]
    %v1946 = vld [vmem:[%s5 + $0x60] sm:$0xff]
    %v1947 = vld [vmem:[%s5 + $0x68] sm:$0xff]
    %v1948 = vld [vmem:[%s5 + $0x70] sm:$0xff]
    %v1949 = vld [vmem:[%s5 + $0x78] sm:$0xff]
    %v1950 = vlaneseq
    %v1951 = vshrl.u32 %v1950, 7
    %v1952 = vsub.s32 0, %v1951
    %v1953 = vrot.slane %v27, %v1952
    %1954 = vmatprep.subr.mxu0 0.0
    %1955 = vmatpush1.msra.mxu0 %v1934
    %1956 = vmatprep.subr.mxu0 0.0
    %1957 = vmatpush1.msra.mxu0 %v1935
    %1958 = vmatprep.subr.mxu0 0.0
    %1959 = vmatpush1.msra.mxu0 %v1936
    %1960 = vmatprep.subr.mxu0 0.0
    %1961 = vmatpush1.msra.mxu0 %v1937
    %1962 = vmatprep.subr.mxu0 0.0
    %1963 = vmatpush1.msra.mxu0 %v1938
    %1964 = vmatprep.subr.mxu0 0.0
    %1965 = vmatpush1.msra.mxu0 %v1939
    %1966 = vmatprep.subr.mxu0 0.0
    %1967 = vmatpush1.msra.mxu0 %v1940
    %1968 = vmatprep.subr.mxu0 0.0
    %1969 = vmatpush1.msra.mxu0 %v1941
    %1970 = vmatprep.subr.mxu0 0.0
    %1971 = vmatpush1.msra.mxu0 %v1942
    %1972 = vmatprep.subr.mxu0 0.0
    %1973 = vmatpush1.msra.mxu0 %v1943
    %1974 = vmatprep.subr.mxu0 0.0
    %1975 = vmatpush1.msra.mxu0 %v1944
    %1976 = vmatprep.subr.mxu0 0.0
    %1977 = vmatpush1.msra.mxu0 %v1945
    %1978 = vmatprep.subr.mxu0 0.0
    %1979 = vmatpush1.msra.mxu0 %v1946
    %1980 = vmatprep.subr.mxu0 0.0
    %1981 = vmatpush1.msra.mxu0 %v1947
    %1982 = vmatprep.subr.mxu0 0.0
    %1983 = vmatpush1.msra.mxu0 %v1948
    %1984 = vmatprep.subr.mxu0 0.0
    %1985 = vmatpush1.msra.mxu0 %v1949
    %1986 = vmatprep.subr.mxu0 0.0
    %1987 = vmatpush1.msra.mxu0 0.0
    %1988 = vmatprep.subr.mxu0 0.0
    %1989 = vmatpush1.msra.mxu0 0.0
    %1990 = vmatprep.subr.mxu0 0.0
    %1991 = vmatpush1.msra.mxu0 0.0
    %1992 = vmatprep.subr.mxu0 0.0
    %1993 = vmatpush1.msra.mxu0 0.0
    %1994 = vmatprep.subr.mxu0 0.0
    %1995 = vmatpush1.msra.mxu0 0.0
    %1996 = vmatprep.subr.mxu0 0.0
    %1997 = vmatpush1.msra.mxu0 0.0
    %1998 = vmatprep.subr.mxu0 0.0
    %1999 = vmatpush1.msra.mxu0 0.0
    %2000 = vmatprep.subr.mxu0 0.0
    %2001 = vmatpush1.msra.mxu0 0.0
    %2002 = vmatprep.subr.mxu0 0.0
    %2003 = vmatpush1.msra.mxu0 0.0
    %2004 = vmatprep.subr.mxu0 0.0
    %2005 = vmatpush1.msra.mxu0 0.0
    %2006 = vmatprep.subr.mxu0 0.0
    %2007 = vmatpush1.msra.mxu0 0.0
    %2008 = vmatprep.subr.mxu0 0.0
    %2009 = vmatpush1.msra.mxu0 0.0
    %2010 = vmatprep.subr.mxu0 0.0
    %2011 = vmatpush1.msra.mxu0 0.0
    %2012 = vmatprep.subr.mxu0 0.0
    %2013 = vmatpush1.msra.mxu0 0.0
    %2014 = vmatprep.subr.mxu0 0.0
    %2015 = vmatpush1.msra.mxu0 0.0
    %2016 = vmatprep.subr.mxu0 0.0
    %2017 = vmatpush1.msra.mxu0 0.0
    %2018 = vmatprep.mubr.f32.mxu0 0.0
    %2019 = vmatmul.mubr.f32.gmra.mrb[0].mxu0 %v1932
    %v2020 = vpop.f32.mrb[0].mxu0
    %v2021 = vadd.f32 %v1953, %v2020
    %v2022 = vpop.f32.mrb[0].mxu0
    %2023 = vmatprep.mubr.f32.mxu0 0.0
    %2024 = vmatmul.mubr.f32.gmra.mrb[0].mxu0 %v1933
    %v2025 = vpop.f32.mrb[0].mxu0
    %v2026 = vadd.f32 %v1953, %v2025
    %v2027 = vpop.f32.mrb[0].mxu0
    %2028 = vdwg.mxu0
    %v2029 = vadd.f32 %v1841, %v2021
    %v2030 = vadd.f32 %v1842, %v2026
    %v2031 = vsel %vm43, %v2029, 0.0
    %2032 = vadd.xlane.f32.xlu0 %v2031
    %v2033 = vpop.xlane.xlu0 %2032
    %v2034 = vsel %vm43, %v2030, 0.0
    %2035 = vadd.xlane.f32.xlu0 %v2034
    %v2036 = vpop.xlane.xlu0 %2035
    %v2037 = vmul.f32 %v2033, %v1810
    %v2038 = vmul.f32 %v2036, %v1810
    %v2039 = vsub.f32 %v2029, %v2037
    %v2040 = vsub.f32 %v2030, %v2038
    %v2041 = vmul.f32 %v2039, %v2039
    %v2042 = vmul.f32 %v2040, %v2040
    %v2043 = vsel %vm43, %v2041, 0.0
    %2044 = vadd.xlane.f32.xlu0 %v2043
    %v2045 = vpop.xlane.xlu0 %2044
    %v2046 = vsel %vm43, %v2042, 0.0
    %2047 = vadd.xlane.f32.xlu0 %v2046
    %v2048 = vpop.xlane.xlu0 %2047
    %v2049 = vmul.f32 %v2045, %v1810
    %v2050 = vmul.f32 %v2048, %v1810
    %v2051 = vadd.f32 %v2049, 1e-05
    %v2052 = vadd.f32 %v2050, 1e-05
    %v2053 = vrsqrt.pop %v2051
    %v2054 = vrsqrt.pop %v2052
    %v2055 = vmul.f32 %v2039, %v2053
    %v2056 = vmul.f32 %v2040, %v2054
    %v2057 = vlaneseq
    %v2058 = vshrl.u32 %v2057, 7
    %v2059 = vsub.s32 3, %v2058
    %v2060 = vrot.slane %v27, %v2059
    %v2061 = vmul.f32 %v2055, %v2060
    %v2062 = vmul.f32 %v2056, %v2060
    %v2063 = vlaneseq
    %v2064 = vshrl.u32 %v2063, 7
    %v2065 = vsub.s32 4, %v2064
    %v2066 = vrot.slane %v27, %v2065
    %v2067 = vadd.f32 %v2061, %v2066
    %v2068 = vadd.f32 %v2062, %v2066
    %2069 = vst.msk [vmem:[#allocation2] sm:$0xff] %vm43, %v2067
    %2070 = vst.msk [vmem:[#allocation2 + $0x8] sm:$0xff] %vm43, %v2068
    // Predicated region
    $region30: #{simple_transformer_encoder.1} parent=1 // pred_check
      _
    $region31: #{simple_transformer_encoder.1} parent=1 // pred_check_branch
      %2072 = sbr.rel (0) target = $region33
    $region32: #{simple_transformer_encoder.1} parent=1 // pred_region
      %s2074 = ssub.s32 256, 256
      %2075 = vsyncadd [#allocation3], %s2074
      %s2076 = sshll.u32 [#allocation2], 4
      %s2077 = int_to_ptr.vmem [resolvable:$true] %s2076
      %2082 = dma.vmem_to_hbm [thread:$0]  %s2077, 256, %s7, [#allocation3], 128, 128, 8
    $region33: #{simple_transformer_encoder.1} parent=1 // pred_fallthru
      _
    // Predicated region
    $region34: #{simple_transformer_encoder.1} parent=1 // pred_check
      _
    $region35: #{simple_transformer_encoder.1} parent=1 // pred_check_branch
      %2084 = sbr.rel (0) target = $region37
    $region36: #{simple_transformer_encoder.1} parent=1 // pred_region
      %2085 = dma.done [#allocation3], 256
    $region37: #{simple_transformer_encoder.1} parent=1 // pred_fallthru
      _
    %2086 = vsyncpa [#allocation3], 1

</llo_original>
